<compile_context>
chip_gen: v7x
topology: tpu7x:2x2x1
jax: 0.10.0
libtpu: 0.0.40
codegen_flags: <defaults>
</compile_context>

<pallas_src>
import functools

import jax
import jax.numpy as jnp
from jax import lax
from jax.experimental import pallas as pl
from jax.experimental.pallas import tpu as pltpu


def _arm_kernel(x_ref, w3_ref, b1_ref, w1_ref, b2_ref, o_ref):
    """One batch element per grid step.

    x_ref : (1, H, W, Cin)     un-padded NHWC input tile (f32)
    w3_ref: (3, 3*Cin, Cout)   3x3 conv weight, BN1 scale folded, bf16,
                               rows ordered (kx, ci) within each ky slice
    b1_ref: (1, Cout)          folded BN1 bias
    w1_ref: (Cout, Cout)       1x1 conv weight * BN2 scale * 1/(H*W)
    b2_ref: (1, Cout)          folded BN2 bias
    o_ref : (1, H, W, Cout)    output tile
    """
    _, H, W, Cin = x_ref.shape
    Cout = o_ref.shape[-1]
    HW = H * W

    # Flatten spatial into the matmul M dimension (layout preserving: W % 8 == 0).
    f = x_ref[0].reshape(HW, Cin)                          # f32 (HW, Cin)
    row = lax.broadcasted_iota(jnp.int32, (HW, 1), 0)      # flattened pixel index
    col = row % W                                          # w coordinate

    # kx-shifted copies via XLU rotate + zeroed border column (== zero padding).
    f_l = jnp.where(col > 0,     pltpu.roll(f, 1,      axis=0), 0.0)   # x[h, w-1]
    f_r = jnp.where(col < W - 1, pltpu.roll(f, HW - 1, axis=0), 0.0)   # x[h, w+1]
    f_cat = jnp.concatenate([f_l, f, f_r], axis=-1)        # (HW, 3*Cin) im2col slab

    # ky-shifted copies of the slab (zeroed border rows == zero padding).
    r0 = jnp.where(row >= W,     pltpu.roll(f_cat, W,      axis=0), 0.0)  # x[h-1, :]
    r2 = jnp.where(row < HW - W, pltpu.roll(f_cat, HW - W, axis=0), 0.0)  # x[h+1, :]

    # 3x3 conv == 3 matmuls (one per ky): bf16 operands, f32 accumulation.
    acc = jnp.zeros((HW, Cout), jnp.float32)
    for ky, r in enumerate((r0, f_cat, r2)):
        acc += jnp.dot(r.astype(jnp.bfloat16), w3_ref[ky],
                       preferred_element_type=jnp.float32)

    # BN1 (scale already folded into w3) + ReLU.
    feat = jnp.maximum(acc + b1_ref[...], 0.0)             # (HW, Cout)

    # Global average pool (1/(H*W) folded into w1) -> 1x1 conv -> BN2 -> sigmoid.
    pooled = jnp.sum(feat, axis=0, keepdims=True)          # (1, Cout), XLU reduce
    att = jax.nn.sigmoid(
        jnp.dot(pooled, w1_ref[...], preferred_element_type=jnp.float32)
        + b2_ref[...])                                     # (1, Cout)

    # Channel-wise attention rescale + store (lane-dense when Cout >= 128).
    o_ref[0] = (feat * att).reshape(H, W, Cout).astype(o_ref.dtype)


@jax.jit
def attention_refinement_module(x_nchw, w3, w1, bn1, bn2):
    """x_nchw: (N, Cin, H, W).  w3: (Cout, Cin, 3, 3).  w1: (Cout, Cout, 1, 1).

    bn1/bn2: dicts with 'gamma','beta','mean','var' each of shape (Cout,).
    Returns (N, Cout, H, W), matching the PyTorch module (inference-mode BN).
    """
    eps = 1e-5
    N, Cin, H, W = x_nchw.shape
    Cout = w3.shape[0]

    x = jnp.transpose(x_nchw, (0, 2, 3, 1))                # NHWC

    # ---- fold BN into weights / biases (one-time, plain JAX on the params) ----
    s1 = bn1['gamma'] / jnp.sqrt(bn1['var'] + eps)
    b1 = (bn1['beta'] - bn1['mean'] * s1).reshape(1, Cout).astype(jnp.float32)
    s2 = bn2['gamma'] / jnp.sqrt(bn2['var'] + eps)
    b2 = (bn2['beta'] - bn2['mean'] * s2).reshape(1, Cout).astype(jnp.float32)

    # (ky, kx, Cin, Cout), BN1 scale folded, grouped as (ky, kx*Cin+ci, co), bf16.
    w3_k = (jnp.transpose(w3, (2, 3, 1, 0)) * s1[None, None, None, :]) \
        .reshape(3, 3 * Cin, Cout).astype(jnp.bfloat16)
    # 1x1 weight (in, out) with BN2 scale and the 1/(H*W) of the pool folded in.
    w1_k = (jnp.transpose(w1[:, :, 0, 0], (1, 0)) * s2[None, :]
            * (1.0 / (H * W))).astype(jnp.float32)

    out_nhwc = pl.pallas_call(
        _arm_kernel,
        out_shape=jax.ShapeDtypeStruct((N, H, W, Cout), x.dtype),
        grid_spec=pltpu.PrefetchScalarGridSpec(
            num_scalar_prefetch=0,
            grid=(N,),
            in_specs=[
                pl.BlockSpec((1, H, W, Cin), lambda n: (n, 0, 0, 0)),
                pl.BlockSpec((3, 3 * Cin, Cout), lambda n: (0, 0, 0)),
                pl.BlockSpec((1, Cout), lambda n: (0, 0)),
                pl.BlockSpec((Cout, Cout), lambda n: (0, 0)),
                pl.BlockSpec((1, Cout), lambda n: (0, 0)),
            ],
            out_specs=pl.BlockSpec((1, H, W, Cout), lambda n: (n, 0, 0, 0)),
        ),
        compiler_params=pltpu.CompilerParams(
            dimension_semantics=("parallel",),
            vmem_limit_bytes=48 * 1024 * 1024),
    )(x, w3_k, b1, w1_k, b2)

    return jnp.transpose(out_nhwc, (0, 3, 1, 2))           # back to NCHW


def _reference(x_nchw, w3, w1, bn1, bn2):
    """Pure-JAX f32 reference mirroring the PyTorch forward (NCHW)."""
    eps = 1e-5

    def bn_apply(v, bn):
        scale = (bn['gamma'] / jnp.sqrt(bn['var'] + eps)).reshape(1, -1, 1, 1)
        bias = (bn['beta'] - bn['mean'] * bn['gamma']
                / jnp.sqrt(bn['var'] + eps)).reshape(1, -1, 1, 1)
        return v * scale + bias

    feat = lax.conv_general_dilated(
        x_nchw, w3, window_strides=(1, 1), padding=((1, 1), (1, 1)),
        dimension_numbers=('NCHW', 'OIHW', 'NCHW'))
    feat = jnp.maximum(bn_apply(feat, bn1), 0.0)
    atten = jnp.mean(feat, axis=(2, 3), keepdims=True)
    atten = lax.conv_general_dilated(
        atten, w1, window_strides=(1, 1), padding=((0, 0), (0, 0)),
        dimension_numbers=('NCHW', 'OIHW', 'NCHW'))
    atten = jax.nn.sigmoid(bn_apply(atten, bn2))
    return feat * atten


if __name__ == "__main__":
    N, Cin, Cout, H, W = 2, 4, 8, 16, 16

    key = jax.random.PRNGKey(0)
    kx, kw3, kw1, kg1, kb1, km1, kv1, kg2, kb2, km2, kv2 = jax.random.split(key, 11)

    x = jax.random.normal(kx, (N, Cin, H, W), dtype=jnp.float32)

    # kaiming_normal_(a=1): gain = sqrt(2/(1+a^2)) = 1, std = 1/sqrt(fan_in)
    w3 = jax.random.normal(kw3, (Cout, Cin, 3, 3), jnp.float32) / jnp.sqrt(Cin * 9.0)
    w1 = jax.random.normal(kw1, (Cout, Cout, 1, 1), jnp.float32) / jnp.sqrt(float(Cout))

    bn1 = dict(gamma=1.0 + 0.1 * jax.random.normal(kg1, (Cout,), jnp.float32),
               beta=0.1 * jax.random.normal(kb1, (Cout,), jnp.float32),
               mean=0.1 * jax.random.normal(km1, (Cout,), jnp.float32),
               var=jnp.abs(jax.random.normal(kv1, (Cout,), jnp.float32)) + 0.5)
    bn2 = dict(gamma=1.0 + 0.1 * jax.random.normal(kg2, (Cout,), jnp.float32),
               beta=0.1 * jax.random.normal(kb2, (Cout,), jnp.float32),
               mean=0.1 * jax.random.normal(km2, (Cout,), jnp.float32),
               var=jnp.abs(jax.random.normal(kv2, (Cout,), jnp.float32)) + 0.5)

    out = attention_refinement_module(x, w3, w1, bn1, bn2)
    out = jax.block_until_ready(out)

    ref = jax.block_until_ready(_reference(x, w3, w1, bn1, bn2))
    assert out.shape == (N, Cout, H, W)
    # bf16 MXU operands with f32 accumulation: tolerance loosened accordingly.
    max_err = jnp.max(jnp.abs(out - ref))
    assert jnp.allclose(out, ref, atol=2e-2, rtol=2e-2), f"max err {max_err}"

    print("KERNEL_OK")
</pallas_src>

<mosaic_0001>
module attributes {stable_mosaic.version = 11 : i64} {
  func.func @_arm_kernel(%arg0: i32, %arg1: memref<1x16x16x4xf32, #tpu.memory_space<vmem>>, %arg2: memref<3x12x8xbf16, #tpu.memory_space<vmem>>, %arg3: memref<1x8xf32, #tpu.memory_space<vmem>>, %arg4: memref<8x8xf32, #tpu.memory_space<vmem>>, %arg5: memref<1x8xf32, #tpu.memory_space<vmem>>, %arg6: memref<1x16x16x8xf32, #tpu.memory_space<vmem>>) attributes {dimension_semantics = [#tpu.dimension_semantics<parallel>], iteration_bounds = array<i64: 2>, scalar_prefetch = 0 : i64, scratch_operands = 0 : i64, tpu.core_type = #tpu.core_type<tc>, window_params = [{transform_indices = @transform_0, window_bounds = array<i64: 1, 16, 16, 4>}, {pipeline_mode = #tpu.pipeline_mode<synchronous>, transform_indices = @transform_1, window_bounds = array<i64: 3, 12, 8>}, {pipeline_mode = #tpu.pipeline_mode<synchronous>, transform_indices = @transform_2, window_bounds = array<i64: 1, 8>}, {pipeline_mode = #tpu.pipeline_mode<synchronous>, transform_indices = @transform_3, window_bounds = array<i64: 8, 8>}, {pipeline_mode = #tpu.pipeline_mode<synchronous>, transform_indices = @transform_4, window_bounds = array<i64: 1, 8>}, {transform_indices = @transform_5, window_bounds = array<i64: 1, 16, 16, 8>}]} {
    %c0 = arith.constant 0 : index
    %c0_0 = arith.constant 0 : index
    %c0_1 = arith.constant 0 : index
    %c0_2 = arith.constant 0 : index
    %0 = vector.load %arg1[%c0, %c0_0, %c0_1, %c0_2] : memref<1x16x16x4xf32, #tpu.memory_space<vmem>>, vector<1x16x16x4xf32>
    %1 = vector.shape_cast %0 : vector<1x16x16x4xf32> to vector<16x16x4xf32>
    %2 = vector.shape_cast %1 : vector<16x16x4xf32> to vector<256x4xf32>
    %3 = tpu.iota {dimensions = array<i32: 0>} : vector<256x1xi32>
    %c16_i32 = arith.constant 16 : i32
    %c0_i32 = arith.constant 0 : i32
    %4 = arith.cmpi eq, %c16_i32, %c0_i32 : i32
    %c1_i32 = arith.constant 1 : i32
    %5 = arith.select %4, %c1_i32, %c16_i32 : i32
    %6 = vector.broadcast %5 : i32 to vector<256x1xi32>
    %7 = arith.remsi %3, %6 : vector<256x1xi32>
    %c0_i32_3 = arith.constant 0 : i32
    %8 = vector.broadcast %c0_i32_3 : i32 to vector<256x1xi32>
    %9 = arith.cmpi ne, %7, %8 : vector<256x1xi32>
    %c0_i32_4 = arith.constant 0 : i32
    %10 = vector.broadcast %c0_i32_4 : i32 to vector<256x1xi32>
    %11 = arith.cmpi slt, %7, %10 : vector<256x1xi32>
    %c0_i32_5 = arith.constant 0 : i32
    %12 = arith.cmpi slt, %5, %c0_i32_5 : i32
    %13 = vector.broadcast %12 : i1 to vector<256x1xi1>
    %14 = vector.broadcast %13 : vector<256x1xi1> to vector<256x1xi1>
    %15 = arith.xori %11, %14 : vector<256x1xi1>
    %16 = arith.andi %15, %9 : vector<256x1xi1>
    %17 = vector.broadcast %5 : i32 to vector<256x1xi32>
    %18 = arith.addi %7, %17 : vector<256x1xi32>
    %19 = arith.select %16, %18, %7 : vector<256x1xi1>, vector<256x1xi32>
    %c0_i32_6 = arith.constant 0 : i32
    %20 = vector.broadcast %c0_i32_6 : i32 to vector<256x1xi32>
    %21 = arith.cmpi sgt, %19, %20 : vector<256x1xi32>
    %c1_i32_7 = arith.constant 1 : i32
    %22 = tpu.dynamic_rotate %2 by %c1_i32_7 dim 0 : vector<256x4xf32>, i32 -> vector<256x4xf32>
    %cst = arith.constant 0.000000e+00 : f32
    %23 = vector.shape_cast %21 : vector<256x1xi1> to vector<256x1xi1>
    %24 = vector.broadcast %23 : vector<256x1xi1> to vector<256x4xi1>
    %25 = vector.broadcast %cst : f32 to vector<256x4xf32>
    %26 = arith.select %24, %22, %25 : vector<256x4xi1>, vector<256x4xf32>
    %c15_i32 = arith.constant 15 : i32
    %27 = vector.broadcast %c15_i32 : i32 to vector<256x1xi32>
    %28 = arith.cmpi slt, %19, %27 : vector<256x1xi32>
    %c255_i32 = arith.constant 255 : i32
    %29 = tpu.dynamic_rotate %2 by %c255_i32 dim 0 : vector<256x4xf32>, i32 -> vector<256x4xf32>
    %cst_8 = arith.constant 0.000000e+00 : f32
    %30 = vector.shape_cast %28 : vector<256x1xi1> to vector<256x1xi1>
    %31 = vector.broadcast %30 : vector<256x1xi1> to vector<256x4xi1>
    %32 = vector.broadcast %cst_8 : f32 to vector<256x4xf32>
    %33 = arith.select %31, %29, %32 : vector<256x4xi1>, vector<256x4xf32>
    %34 = tpu.concatenate %26, %2, %33 in 1 : vector<256x4xf32>, vector<256x4xf32>, vector<256x4xf32> -> vector<256x12xf32>
    %c16_i32_9 = arith.constant 16 : i32
    %35 = vector.broadcast %c16_i32_9 : i32 to vector<256x1xi32>
    %36 = arith.cmpi sge, %3, %35 : vector<256x1xi32>
    %c16_i32_10 = arith.constant 16 : i32
    %37 = tpu.dynamic_rotate %34 by %c16_i32_10 dim 0 : vector<256x12xf32>, i32 -> vector<256x12xf32>
    %cst_11 = arith.constant 0.000000e+00 : f32
    %38 = vector.shape_cast %36 : vector<256x1xi1> to vector<256x1xi1>
    %39 = vector.broadcast %38 : vector<256x1xi1> to vector<256x12xi1>
    %40 = vector.broadcast %cst_11 : f32 to vector<256x12xf32>
    %41 = arith.select %39, %37, %40 : vector<256x12xi1>, vector<256x12xf32>
    %c240_i32 = arith.constant 240 : i32
    %42 = vector.broadcast %c240_i32 : i32 to vector<256x1xi32>
    %43 = arith.cmpi slt, %3, %42 : vector<256x1xi32>
    %c240_i32_12 = arith.constant 240 : i32
    %44 = tpu.dynamic_rotate %34 by %c240_i32_12 dim 0 : vector<256x12xf32>, i32 -> vector<256x12xf32>
    %cst_13 = arith.constant 0.000000e+00 : f32
    %45 = vector.shape_cast %43 : vector<256x1xi1> to vector<256x1xi1>
    %46 = vector.broadcast %45 : vector<256x1xi1> to vector<256x12xi1>
    %47 = vector.broadcast %cst_13 : f32 to vector<256x12xf32>
    %48 = arith.select %46, %44, %47 : vector<256x12xi1>, vector<256x12xf32>
    %cst_14 = arith.constant 0.000000e+00 : f32
    %49 = vector.broadcast %cst_14 : f32 to vector<256x8xf32>
    %50 = arith.truncf %41 : vector<256x12xf32> to vector<256x12xbf16>
    %c0_15 = arith.constant 0 : index
    %c0_16 = arith.constant 0 : index
    %c0_17 = arith.constant 0 : index
    %51 = vector.load %arg2[%c0_15, %c0_16, %c0_17] : memref<3x12x8xbf16, #tpu.memory_space<vmem>>, vector<1x12x8xbf16>
    %52 = vector.shape_cast %51 : vector<1x12x8xbf16> to vector<12x8xbf16>
    %cst_18 = arith.constant dense<0.000000e+00> : vector<256x8xf32>
    %53 = tpu.matmul %50, %52, %cst_18 {dimension_numbers = #tpu.dot_dimension_numbers<[1], [0], [0], [1], [0, 0, 1, 1], [], []>} : vector<256x12xbf16>, vector<12x8xbf16>, vector<256x8xf32> -> vector<256x8xf32>
    %54 = arith.addf %49, %53 : vector<256x8xf32>
    %55 = arith.truncf %34 : vector<256x12xf32> to vector<256x12xbf16>
    %c1 = arith.constant 1 : index
    %c0_19 = arith.constant 0 : index
    %c0_20 = arith.constant 0 : index
    %56 = vector.load %arg2[%c1, %c0_19, %c0_20] : memref<3x12x8xbf16, #tpu.memory_space<vmem>>, vector<1x12x8xbf16>
    %57 = vector.shape_cast %56 : vector<1x12x8xbf16> to vector<12x8xbf16>
    %cst_21 = arith.constant dense<0.000000e+00> : vector<256x8xf32>
    %58 = tpu.matmul %55, %57, %cst_21 {dimension_numbers = #tpu.dot_dimension_numbers<[1], [0], [0], [1], [0, 0, 1, 1], [], []>} : vector<256x12xbf16>, vector<12x8xbf16>, vector<256x8xf32> -> vector<256x8xf32>
    %59 = arith.addf %54, %58 : vector<256x8xf32>
    %60 = arith.truncf %48 : vector<256x12xf32> to vector<256x12xbf16>
    %c2 = arith.constant 2 : index
    %c0_22 = arith.constant 0 : index
    %c0_23 = arith.constant 0 : index
    %61 = vector.load %arg2[%c2, %c0_22, %c0_23] : memref<3x12x8xbf16, #tpu.memory_space<vmem>>, vector<1x12x8xbf16>
    %62 = vector.shape_cast %61 : vector<1x12x8xbf16> to vector<12x8xbf16>
    %cst_24 = arith.constant dense<0.000000e+00> : vector<256x8xf32>
    %63 = tpu.matmul %60, %62, %cst_24 {dimension_numbers = #tpu.dot_dimension_numbers<[1], [0], [0], [1], [0, 0, 1, 1], [], []>} : vector<256x12xbf16>, vector<12x8xbf16>, vector<256x8xf32> -> vector<256x8xf32>
    %64 = arith.addf %59, %63 : vector<256x8xf32>
    %c0_25 = arith.constant 0 : index
    %c0_26 = arith.constant 0 : index
    %65 = vector.load %arg3[%c0_25, %c0_26] : memref<1x8xf32, #tpu.memory_space<vmem>>, vector<1x8xf32>
    %66 = vector.broadcast %65 : vector<1x8xf32> to vector<256x8xf32>
    %67 = arith.addf %64, %66 : vector<256x8xf32>
    %cst_27 = arith.constant 0.000000e+00 : f32
    %68 = vector.broadcast %cst_27 : f32 to vector<256x8xf32>
    %69 = arith.maximumf %67, %68 : vector<256x8xf32>
    %cst_28 = arith.constant dense<0.000000e+00> : vector<8xf32>
    %70 = vector.multi_reduction <add>, %69, %cst_28 [0] : vector<256x8xf32> to vector<8xf32>
    %71 = vector.shape_cast %70 : vector<8xf32> to vector<1x8xf32>
    %c0_29 = arith.constant 0 : index
    %c0_30 = arith.constant 0 : index
    %72 = vector.load %arg4[%c0_29, %c0_30] : memref<8x8xf32, #tpu.memory_space<vmem>>, vector<8x8xf32>
    %cst_31 = arith.constant dense<0.000000e+00> : vector<1x8xf32>
    %73 = tpu.matmul %71, %72, %cst_31 {dimension_numbers = #tpu.dot_dimension_numbers<[1], [0], [0], [1], [0, 0, 1, 1], [], []>} : vector<1x8xf32>, vector<8x8xf32>, vector<1x8xf32> -> vector<1x8xf32>
    %c0_32 = arith.constant 0 : index
    %c0_33 = arith.constant 0 : index
    %74 = vector.load %arg5[%c0_32, %c0_33] : memref<1x8xf32, #tpu.memory_space<vmem>>, vector<1x8xf32>
    %75 = arith.addf %73, %74 : vector<1x8xf32>
    %76 = arith.negf %75 : vector<1x8xf32>
    %77 = math.exp %76 : vector<1x8xf32>
    %cst_34 = arith.constant 1.000000e+00 : f32
    %78 = vector.broadcast %cst_34 : f32 to vector<1x8xf32>
    %79 = arith.addf %78, %77 : vector<1x8xf32>
    %80 = arith.divf %78, %79 : vector<1x8xf32>
    %81 = vector.broadcast %80 : vector<1x8xf32> to vector<256x8xf32>
    %82 = arith.mulf %69, %81 : vector<256x8xf32>
    %83 = vector.shape_cast %82 : vector<256x8xf32> to vector<16x16x8xf32>
    %c0_35 = arith.constant 0 : index
    %c0_36 = arith.constant 0 : index
    %c0_37 = arith.constant 0 : index
    %c0_38 = arith.constant 0 : index
    %84 = vector.load %arg6[%c0_35, %c0_36, %c0_37, %c0_38] : memref<1x16x16x8xf32, #tpu.memory_space<vmem>>, vector<1x16x16x8xf32>
    %85 = vector.shape_cast %84 : vector<1x16x16x8xf32> to vector<16x16x8xf32>
    %86 = vector.shape_cast %83 : vector<16x16x8xf32> to vector<1x16x16x8xf32>
    tpu.vector_store %arg6[%c0_35, %c0_36, %c0_37, %c0_38], %86 {strides = array<i32>} : memref<1x16x16x8xf32, #tpu.memory_space<vmem>>, vector<1x16x16x8xf32>,
    return
  }
  func.func @transform_0(%arg0: i32) -> (i32, i32, i32, i32) {
    %c0_i32 = arith.constant 0 : i32
    %c0_i32_0 = arith.constant 0 : i32
    %c0_i32_1 = arith.constant 0 : i32
    %c0_i32_2 = arith.constant 0 : i32
    return %arg0, %c0_i32, %c0_i32_0, %c0_i32_1 : i32, i32, i32, i32
  }
  func.func @transform_1(%arg0: i32) -> (i32, i32, i32) {
    %c0_i32 = arith.constant 0 : i32
    %c0_i32_0 = arith.constant 0 : i32
    %c0_i32_1 = arith.constant 0 : i32
    %c0_i32_2 = arith.constant 0 : i32
    return %c0_i32, %c0_i32_0, %c0_i32_1 : i32, i32, i32
  }
  func.func @transform_2(%arg0: i32) -> (i32, i32) {
    %c0_i32 = arith.constant 0 : i32
    %c0_i32_0 = arith.constant 0 : i32
    %c0_i32_1 = arith.constant 0 : i32
    return %c0_i32, %c0_i32_0 : i32, i32
  }
  func.func @transform_3(%arg0: i32) -> (i32, i32) {
    %c0_i32 = arith.constant 0 : i32
    %c0_i32_0 = arith.constant 0 : i32
    %c0_i32_1 = arith.constant 0 : i32
    return %c0_i32, %c0_i32_0 : i32, i32
  }
  func.func @transform_4(%arg0: i32) -> (i32, i32) {
    %c0_i32 = arith.constant 0 : i32
    %c0_i32_0 = arith.constant 0 : i32
    %c0_i32_1 = arith.constant 0 : i32
    return %c0_i32, %c0_i32_0 : i32, i32
  }
  func.func @transform_5(%arg0: i32) -> (i32, i32, i32, i32) {
    %c0_i32 = arith.constant 0 : i32
    %c0_i32_0 = arith.constant 0 : i32
    %c0_i32_1 = arith.constant 0 : i32
    %c0_i32_2 = arith.constant 0 : i32
    return %arg0, %c0_i32, %c0_i32_0, %c0_i32_1 : i32, i32, i32, i32
  }
}

</mosaic_0001>

<llo_original>
// kernel: attention_refinement_module.1
$region0: #{attention_refinement_module.1}
  #allocation0 [shape = 'u32[]', space=smem, size = 0x4, offset = 0x4, fixed_abs, tag = 'smem constant byte address 0x4 - core index']
  #allocation1 [shape = 'u32[144,128]{1,0:T(1,128)}', space=vmem, size = 0x12000, scoped, tag = 'internal scratch']
  %s0 = inlined_call_operand.vmem [shape: f32[2,16,16,4], index: 0, kind: input, shape index: {}]
  %s1 = inlined_call_operand.vmem [shape: bf16[3,12,8], index: 1, kind: input, shape index: {}]
  %s2 = inlined_call_operand.vmem [shape: f32[1,8], index: 2, kind: input, shape index: {}]
  %s3 = inlined_call_operand.vmem [shape: f32[8,8], index: 3, kind: input, shape index: {}]
  %s4 = inlined_call_operand.vmem [shape: f32[1,8], index: 4, kind: input, shape index: {}]
  %s5 = inlined_call_operand.vmem [shape: f32[2,16,16,8], index: 5, kind: output, shape index: {}]
  %s6 = sld [smem:[#allocation0]]
  $region53: #{attention_refinement_module.1} parent=0
    _
  %s8 = ssub.s32 1, %s6
  %s9 = scalar_select 0, %s8, %s6
  loop: start=0, step=1, limit=4
  $region2: #{attention_refinement_module.1} parent=0 // loop_pre_header
    _
  $region3: #{attention_refinement_module.1} parent=0 // loop_header
    %s11 = sphi 0, %s15
    %p12 = scmp.ge.s32.totalorder %s11, 4
    %s21 = sphi 0, %s23
    %s24 = sphi 0, %s21
    %s25 = sphi 0, %s24
    %s41 = sphi 0, %s25
    %s45 = sphi 0, %s45
    %s47 = sphi 0, %s45
    %s48 = sphi 0, %s47
    %s62 = sphi 0, %s48
    %s66 = sphi 0, %s66
    %s68 = sphi 0, %s66
    %s69 = sphi 0, %s68
    %s83 = sphi 0, %s69
    %s87 = sphi 0, %s87
    %s89 = sphi 0, %s87
    %s90 = sphi 0, %s89
    %s104 = sphi 0, %s90
    %s108 = sphi 0, %s108
    %s110 = sphi 0, %s108
    %s111 = sphi 0, %s110
    %s125 = sphi 0, %s111
    %s131 = sphi 0, %s133
    %s134 = sphi 0, %s131
    %s135 = sphi 0, %s134
    %s151 = sphi 0, %s135
  $region4: #{attention_refinement_module.1} parent=0 // loop_header_branch
    %14 = sbr.rel (%p12) target = $region8
  $region5: #{attention_refinement_module.1} parent=0 // loop_body
    %s16 = ssub.s32 %s11, 1
    %s17 = ssub.s32 %s11, 2
    %s18 = sadd.s32 %s11, 1
    %s19 = ssub.s32 %s11, %s18
    %p20 = scmp.eq.s32.totalorder %s19, 0
    %s22 = sadd.s32 %s21, 1
    %s23 = scalar_select %p20, %s21, %s22
    %p26 = pneg %p20
    %p27 = scmp.eq.s32.totalorder %s11, 1
    %p28 = por %p26, %p27
    %p29 = scmp.ne.s32.totalorder %s21, %s24
    %p30 = scmp.eq.s32.totalorder %s11, 0
    %p31 = por %p29, %p30
    %p32 = scmp.ne.s32.totalorder %s21, %s24
    %p33 = scmp.eq.s32.totalorder %s16, 1
    %p34 = por %p32, %p33
    %p35 = scmp.ne.s32.totalorder %s24, %s25
    %p36 = scmp.eq.s32.totalorder %s16, 0
    %p37 = por %p35, %p36
    %p38 = scmp.ne.s32.totalorder %s24, %s25
    %p39 = scmp.eq.s32.totalorder %s17, 1
    %p40 = por %p38, %p39
    %p42 = scmp.ne.s32.totalorder %s25, %s41
    %p43 = scmp.eq.s32.totalorder %s17, 0
    %p44 = por %p42, %p43
    %s46 = sadd.s32 %s45, 1
    %p49 = scmp.eq.s32.totalorder %s11, 1
    %p50 = scmp.ne.s32.totalorder %s45, %s47
    %p51 = scmp.eq.s32.totalorder %s11, 0
    %p52 = por %p50, %p51
    %p53 = scmp.ne.s32.totalorder %s45, %s47
    %p54 = scmp.eq.s32.totalorder %s16, 1
    %p55 = por %p53, %p54
    %p56 = scmp.ne.s32.totalorder %s47, %s48
    %p57 = scmp.eq.s32.totalorder %s16, 0
    %p58 = por %p56, %p57
    %p59 = scmp.ne.s32.totalorder %s47, %s48
    %p60 = scmp.eq.s32.totalorder %s17, 1
    %p61 = por %p59, %p60
    %p63 = scmp.ne.s32.totalorder %s48, %s62
    %p64 = scmp.eq.s32.totalorder %s17, 0
    %p65 = por %p63, %p64
    %s67 = sadd.s32 %s66, 1
    %p70 = scmp.eq.s32.totalorder %s11, 1
    %p71 = scmp.ne.s32.totalorder %s66, %s68
    %p72 = scmp.eq.s32.totalorder %s11, 0
    %p73 = por %p71, %p72
    %p74 = scmp.ne.s32.totalorder %s66, %s68
    %p75 = scmp.eq.s32.totalorder %s16, 1
    %p76 = por %p74, %p75
    %p77 = scmp.ne.s32.totalorder %s68, %s69
    %p78 = scmp.eq.s32.totalorder %s16, 0
    %p79 = por %p77, %p78
    %p80 = scmp.ne.s32.totalorder %s68, %s69
    %p81 = scmp.eq.s32.totalorder %s17, 1
    %p82 = por %p80, %p81
    %p84 = scmp.ne.s32.totalorder %s69, %s83
    %p85 = scmp.eq.s32.totalorder %s17, 0
    %p86 = por %p84, %p85
    %s88 = sadd.s32 %s87, 1
    %p91 = scmp.eq.s32.totalorder %s11, 1
    %p92 = scmp.ne.s32.totalorder %s87, %s89
    %p93 = scmp.eq.s32.totalorder %s11, 0
    %p94 = por %p92, %p93
    %p95 = scmp.ne.s32.totalorder %s87, %s89
    %p96 = scmp.eq.s32.totalorder %s16, 1
    %p97 = por %p95, %p96
    %p98 = scmp.ne.s32.totalorder %s89, %s90
    %p99 = scmp.eq.s32.totalorder %s16, 0
    %p100 = por %p98, %p99
    %p101 = scmp.ne.s32.totalorder %s89, %s90
    %p102 = scmp.eq.s32.totalorder %s17, 1
    %p103 = por %p101, %p102
    %p105 = scmp.ne.s32.totalorder %s90, %s104
    %p106 = scmp.eq.s32.totalorder %s17, 0
    %p107 = por %p105, %p106
    %s109 = sadd.s32 %s108, 1
    %p112 = scmp.eq.s32.totalorder %s11, 1
    %p113 = scmp.ne.s32.totalorder %s108, %s110
    %p114 = scmp.eq.s32.totalorder %s11, 0
    %p115 = por %p113, %p114
    %p116 = scmp.ne.s32.totalorder %s108, %s110
    %p117 = scmp.eq.s32.totalorder %s16, 1
    %p118 = por %p116, %p117
    %p119 = scmp.ne.s32.totalorder %s110, %s111
    %p120 = scmp.eq.s32.totalorder %s16, 0
    %p121 = por %p119, %p120
    %p122 = scmp.ne.s32.totalorder %s110, %s111
    %p123 = scmp.eq.s32.totalorder %s17, 1
    %p124 = por %p122, %p123
    %p126 = scmp.ne.s32.totalorder %s111, %s125
    %p127 = scmp.eq.s32.totalorder %s17, 0
    %p128 = por %p126, %p127
    %s129 = ssub.s32 %s11, %s18
    %p130 = scmp.eq.s32.totalorder %s129, 0
    %s132 = sadd.s32 %s131, 1
    %s133 = scalar_select %p130, %s131, %s132
    %p136 = pneg %p130
    %p137 = scmp.eq.s32.totalorder %s11, 1
    %p138 = por %p136, %p137
    %p139 = scmp.ne.s32.totalorder %s131, %s134
    %p140 = scmp.eq.s32.totalorder %s11, 0
    %p141 = por %p139, %p140
    %p142 = scmp.ne.s32.totalorder %s131, %s134
    %p143 = scmp.eq.s32.totalorder %s16, 1
    %p144 = por %p142, %p143
    %p145 = scmp.ne.s32.totalorder %s134, %s135
    %p146 = scmp.eq.s32.totalorder %s16, 0
    %p147 = por %p145, %p146
    %p148 = scmp.ne.s32.totalorder %s134, %s135
    %p149 = scmp.eq.s32.totalorder %s17, 1
    %p150 = por %p148, %p149
    %p152 = scmp.ne.s32.totalorder %s135, %s151
    %p153 = scmp.eq.s32.totalorder %s17, 0
    %p154 = por %p152, %p153
    %p155 = scmp.le.s32.totalorder 1, %s11
    %p156 = scmp.lt.s32.totalorder %s11, 3
    %p157 = pnand %p155, %p156
    %p158 = pneg %p157
    // Predicated region
    $region9: #{attention_refinement_module.1} parent=5 // pred_check
      _
    $region10: #{attention_refinement_module.1} parent=5 // pred_check_branch
      %160 = sbr.rel (%p157) target = $region12
    $region11: #{attention_refinement_module.1} parent=5 // pred_region
      %s161 = ssub.s32 %s11, 1
      // Predicated region
      $region13: #{attention_refinement_module.1} parent=11 // pred_check
        %p162 = pneg %p58
      $region14: #{attention_refinement_module.1} parent=11 // pred_check_branch
        %164 = sbr.rel (%p162) target = $region16
      $region15: #{attention_refinement_module.1} parent=11 // pred_region
        _
      $region16: #{attention_refinement_module.1} parent=11 // pred_fallthru
        _
      // Predicated region
      $region17: #{attention_refinement_module.1} parent=11 // pred_check
        %p165 = pneg %p79
      $region18: #{attention_refinement_module.1} parent=11 // pred_check_branch
        %167 = sbr.rel (%p165) target = $region20
      $region19: #{attention_refinement_module.1} parent=11 // pred_region
        _
      $region20: #{attention_refinement_module.1} parent=11 // pred_fallthru
        _
      // Predicated region
      $region21: #{attention_refinement_module.1} parent=11 // pred_check
        %p168 = pneg %p100
      $region22: #{attention_refinement_module.1} parent=11 // pred_check_branch
        %170 = sbr.rel (%p168) target = $region24
      $region23: #{attention_refinement_module.1} parent=11 // pred_region
        _
      $region24: #{attention_refinement_module.1} parent=11 // pred_fallthru
        _
      // Predicated region
      $region25: #{attention_refinement_module.1} parent=11 // pred_check
        %p171 = pneg %p121
      $region26: #{attention_refinement_module.1} parent=11 // pred_check_branch
        %173 = sbr.rel (%p171) target = $region28
      $region27: #{attention_refinement_module.1} parent=11 // pred_region
        _
      $region28: #{attention_refinement_module.1} parent=11 // pred_fallthru
        _
    $region12: #{attention_refinement_module.1} parent=5 // pred_fallthru
      _
    %p174 = scmp.lt.s32.totalorder %s11, 2
    // Predicated region
    $region29: #{attention_refinement_module.1} parent=5 // pred_check
      %p175 = pneg %p174
    $region30: #{attention_refinement_module.1} parent=5 // pred_check_branch
      %177 = sbr.rel (%p175) target = $region32
    $region31: #{attention_refinement_module.1} parent=5 // pred_region
      // Predicated region
      $region33: #{attention_refinement_module.1} parent=31 // pred_check
        %p178 = pneg %p31
      $region34: #{attention_refinement_module.1} parent=31 // pred_check_branch
        %180 = sbr.rel (%p178) target = $region36
      $region35: #{attention_refinement_module.1} parent=31 // pred_region
        %p181 = scmp.lt.s32.totalorder %s11, 1
        %s182 = scalar_select %p181, %s11, 1
        %s183 = smul.addr %s182, 32
        %s184 = smul.addr %s183, 8
        %s185 = scalar_lea.vmem %s0, %s184
      $region36: #{attention_refinement_module.1} parent=31 // pred_fallthru
        _
    $region32: #{attention_refinement_module.1} parent=5 // pred_fallthru
      _
    %p186 = scmp.le.s32.totalorder 1, %s11
    %p187 = scmp.lt.s32.totalorder %s11, 3
    %p188 = pnand %p186, %p187
    %p189 = pneg %p188
    // Predicated region
    $region37: #{attention_refinement_module.1} parent=5 // pred_check
      _
    $region38: #{attention_refinement_module.1} parent=5 // pred_check_branch
      %191 = sbr.rel (%p188) target = $region40
    $region39: #{attention_refinement_module.1} parent=5 // pred_region
      %s192 = ssub.s32 %s11, 1
      %p193 = scmp.lt.s32.totalorder %s16, 1
      %s194 = scalar_select %p193, %s16, 1
      %s195 = smul.addr %s194, 32
      %s196 = smul.addr %s195, 8
      %s197 = scalar_lea.vmem %s0, %s196
      %p198 = pneg %p37
      %p199 = pneg %p34
      %p200 = pneg %p58
      %p201 = pneg %p55
      %p202 = pneg %p79
      %p203 = pneg %p76
      %p204 = pneg %p100
      %p205 = pneg %p97
      %p206 = pneg %p121
      %p207 = pneg %p118
      %p208 = pneg %p147
      %p209 = pneg %p144
      %p210 = scmp.lt.s32.totalorder %s16, 1
      %s211 = scalar_select %p210, %s16, 1
      %s212 = smul.addr %s211, 32
      %s213 = smul.addr %s212, 8
      %s214 = scalar_lea.vmem %s5, %s213
      %p215 = scmp.lt.s32.totalorder %s16, 1
      %s216 = scalar_select %p215, %s16, 1
      %s217 = smul.addr %s216, 32
      %s218 = smul.addr %s217, 8
      %s219 = scalar_lea.vmem %s0, %s218
      %p220 = scmp.lt.s32.totalorder %s16, 1
      %s221 = scalar_select %p220, %s16, 1
      %s222 = smul.addr %s221, 32
      %s223 = smul.addr %s222, 8
      %s224 = scalar_lea.vmem %s5, %s223
      %v226 = vld [vmem:[%s219] sm:$0xff]
      %v227 = vld [vmem:[%s219 + $0x8] sm:$0xff]
      %v228 = vld [vmem:[%s219 + $0x10] sm:$0xff]
      %v229 = vld [vmem:[%s219 + $0x18] sm:$0xff]
      %v230 = vld [vmem:[%s219 + $0x20] sm:$0xff]
      %v231 = vld [vmem:[%s219 + $0x28] sm:$0xff]
      %v232 = vld [vmem:[%s219 + $0x30] sm:$0xff]
      %v233 = vld [vmem:[%s219 + $0x38] sm:$0xff]
      %v234 = vld [vmem:[%s219 + $0x40] sm:$0xff]
      %v235 = vld [vmem:[%s219 + $0x48] sm:$0xff]
      %v236 = vld [vmem:[%s219 + $0x50] sm:$0xff]
      %v237 = vld [vmem:[%s219 + $0x58] sm:$0xff]
      %v238 = vld [vmem:[%s219 + $0x60] sm:$0xff]
      %v239 = vld [vmem:[%s219 + $0x68] sm:$0xff]
      %v240 = vld [vmem:[%s219 + $0x70] sm:$0xff]
      %v241 = vld [vmem:[%s219 + $0x78] sm:$0xff]
      %v242 = vld [vmem:[%s219 + $0x80] sm:$0xff]
      %v243 = vld [vmem:[%s219 + $0x88] sm:$0xff]
      %v244 = vld [vmem:[%s219 + $0x90] sm:$0xff]
      %v245 = vld [vmem:[%s219 + $0x98] sm:$0xff]
      %v246 = vld [vmem:[%s219 + $0xa0] sm:$0xff]
      %v247 = vld [vmem:[%s219 + $0xa8] sm:$0xff]
      %v248 = vld [vmem:[%s219 + $0xb0] sm:$0xff]
      %v249 = vld [vmem:[%s219 + $0xb8] sm:$0xff]
      %v250 = vld [vmem:[%s219 + $0xc0] sm:$0xff]
      %v251 = vld [vmem:[%s219 + $0xc8] sm:$0xff]
      %v252 = vld [vmem:[%s219 + $0xd0] sm:$0xff]
      %v253 = vld [vmem:[%s219 + $0xd8] sm:$0xff]
      %v254 = vld [vmem:[%s219 + $0xe0] sm:$0xff]
      %v255 = vld [vmem:[%s219 + $0xe8] sm:$0xff]
      %v256 = vld [vmem:[%s219 + $0xf0] sm:$0xff]
      %v257 = vld [vmem:[%s219 + $0xf8] sm:$0xff]
      %v258 = vlaneseq
      %v259 = vshrl.u32 %v258, 7
      %v260 = vadd.s32 %v259, 8
      %v261 = vadd.s32 %v259, 16
      %v262 = vadd.s32 %v259, 24
      %v263 = vadd.s32 %v259, 32
      %v264 = vadd.s32 %v259, 40
      %v265 = vadd.s32 %v259, 48
      %v266 = vadd.s32 %v259, 56
      %v267 = vadd.s32 %v259, 64
      %v268 = vadd.s32 %v259, 72
      %v269 = vadd.s32 %v259, 80
      %v270 = vadd.s32 %v259, 88
      %v271 = vadd.s32 %v259, 96
      %v272 = vadd.s32 %v259, 104
      %v273 = vadd.s32 %v259, 112
      %v274 = vadd.s32 %v259, 120
      %v275 = vadd.s32 %v259, 128
      %v276 = vadd.s32 %v259, 136
      %v277 = vadd.s32 %v259, 144
      %v278 = vadd.s32 %v259, 152
      %v279 = vadd.s32 %v259, 160
      %v280 = vadd.s32 %v259, 168
      %v281 = vadd.s32 %v259, 176
      %v282 = vadd.s32 %v259, 184
      %v283 = vadd.s32 %v259, 192
      %v284 = vadd.s32 %v259, 200
      %v285 = vadd.s32 %v259, 208
      %v286 = vadd.s32 %v259, 216
      %v287 = vadd.s32 %v259, 224
      %v288 = vadd.s32 %v259, 232
      %v289 = vadd.s32 %v259, 240
      %v290 = vadd.s32 %v259, 248
      %vm291 = vcmp.lt.s32.totalorder %v259, 0
      %v292 = vsub.s32 0, %v259
      %v293 = vsel %vm291, %v292, %v259
      %v294 = vshrl.u32 %v293, 4
      %v295 = vand.u32 %v293, 15
      %v296 = vsub.s32 0, %v295
      %v297 = vsel %vm291, %v296, %v295
      %vm298 = vcmp.lt.s32.totalorder %v260, 0
      %v299 = vsub.s32 0, %v260
      %v300 = vsel %vm298, %v299, %v260
      %v301 = vshrl.u32 %v300, 4
      %v302 = vand.u32 %v300, 15
      %v303 = vsub.s32 0, %v302
      %v304 = vsel %vm298, %v303, %v302
      %vm305 = vcmp.lt.s32.totalorder %v261, 0
      %v306 = vsub.s32 0, %v261
      %v307 = vsel %vm305, %v306, %v261
      %v308 = vshrl.u32 %v307, 4
      %v309 = vand.u32 %v307, 15
      %v310 = vsub.s32 0, %v309
      %v311 = vsel %vm305, %v310, %v309
      %vm312 = vcmp.lt.s32.totalorder %v262, 0
      %v313 = vsub.s32 0, %v262
      %v314 = vsel %vm312, %v313, %v262
      %v315 = vshrl.u32 %v314, 4
      %v316 = vand.u32 %v314, 15
      %v317 = vsub.s32 0, %v316
      %v318 = vsel %vm312, %v317, %v316
      %vm319 = vcmp.lt.s32.totalorder %v263, 0
      %v320 = vsub.s32 0, %v263
      %v321 = vsel %vm319, %v320, %v263
      %v322 = vshrl.u32 %v321, 4
      %v323 = vand.u32 %v321, 15
      %v324 = vsub.s32 0, %v323
      %v325 = vsel %vm319, %v324, %v323
      %vm326 = vcmp.lt.s32.totalorder %v264, 0
      %v327 = vsub.s32 0, %v264
      %v328 = vsel %vm326, %v327, %v264
      %v329 = vshrl.u32 %v328, 4
      %v330 = vand.u32 %v328, 15
      %v331 = vsub.s32 0, %v330
      %v332 = vsel %vm326, %v331, %v330
      %vm333 = vcmp.lt.s32.totalorder %v265, 0
      %v334 = vsub.s32 0, %v265
      %v335 = vsel %vm333, %v334, %v265
      %v336 = vshrl.u32 %v335, 4
      %v337 = vand.u32 %v335, 15
      %v338 = vsub.s32 0, %v337
      %v339 = vsel %vm333, %v338, %v337
      %vm340 = vcmp.lt.s32.totalorder %v266, 0
      %v341 = vsub.s32 0, %v266
      %v342 = vsel %vm340, %v341, %v266
      %v343 = vshrl.u32 %v342, 4
      %v344 = vand.u32 %v342, 15
      %v345 = vsub.s32 0, %v344
      %v346 = vsel %vm340, %v345, %v344
      %vm347 = vcmp.lt.s32.totalorder %v267, 0
      %v348 = vsub.s32 0, %v267
      %v349 = vsel %vm347, %v348, %v267
      %v350 = vshrl.u32 %v349, 4
      %v351 = vand.u32 %v349, 15
      %v352 = vsub.s32 0, %v351
      %v353 = vsel %vm347, %v352, %v351
      %vm354 = vcmp.lt.s32.totalorder %v268, 0
      %v355 = vsub.s32 0, %v268
      %v356 = vsel %vm354, %v355, %v268
      %v357 = vshrl.u32 %v356, 4
      %v358 = vand.u32 %v356, 15
      %v359 = vsub.s32 0, %v358
      %v360 = vsel %vm354, %v359, %v358
      %vm361 = vcmp.lt.s32.totalorder %v269, 0
      %v362 = vsub.s32 0, %v269
      %v363 = vsel %vm361, %v362, %v269
      %v364 = vshrl.u32 %v363, 4
      %v365 = vand.u32 %v363, 15
      %v366 = vsub.s32 0, %v365
      %v367 = vsel %vm361, %v366, %v365
      %vm368 = vcmp.lt.s32.totalorder %v270, 0
      %v369 = vsub.s32 0, %v270
      %v370 = vsel %vm368, %v369, %v270
      %v371 = vshrl.u32 %v370, 4
      %v372 = vand.u32 %v370, 15
      %v373 = vsub.s32 0, %v372
      %v374 = vsel %vm368, %v373, %v372
      %vm375 = vcmp.lt.s32.totalorder %v271, 0
      %v376 = vsub.s32 0, %v271
      %v377 = vsel %vm375, %v376, %v271
      %v378 = vshrl.u32 %v377, 4
      %v379 = vand.u32 %v377, 15
      %v380 = vsub.s32 0, %v379
      %v381 = vsel %vm375, %v380, %v379
      %vm382 = vcmp.lt.s32.totalorder %v272, 0
      %v383 = vsub.s32 0, %v272
      %v384 = vsel %vm382, %v383, %v272
      %v385 = vshrl.u32 %v384, 4
      %v386 = vand.u32 %v384, 15
      %v387 = vsub.s32 0, %v386
      %v388 = vsel %vm382, %v387, %v386
      %vm389 = vcmp.lt.s32.totalorder %v273, 0
      %v390 = vsub.s32 0, %v273
      %v391 = vsel %vm389, %v390, %v273
      %v392 = vshrl.u32 %v391, 4
      %v393 = vand.u32 %v391, 15
      %v394 = vsub.s32 0, %v393
      %v395 = vsel %vm389, %v394, %v393
      %vm396 = vcmp.lt.s32.totalorder %v274, 0
      %v397 = vsub.s32 0, %v274
      %v398 = vsel %vm396, %v397, %v274
      %v399 = vshrl.u32 %v398, 4
      %v400 = vand.u32 %v398, 15
      %v401 = vsub.s32 0, %v400
      %v402 = vsel %vm396, %v401, %v400
      %vm403 = vcmp.lt.s32.totalorder %v275, 0
      %v404 = vsub.s32 0, %v275
      %v405 = vsel %vm403, %v404, %v275
      %v406 = vshrl.u32 %v405, 4
      %v407 = vand.u32 %v405, 15
      %v408 = vsub.s32 0, %v407
      %v409 = vsel %vm403, %v408, %v407
      %vm410 = vcmp.lt.s32.totalorder %v276, 0
      %v411 = vsub.s32 0, %v276
      %v412 = vsel %vm410, %v411, %v276
      %v413 = vshrl.u32 %v412, 4
      %v414 = vand.u32 %v412, 15
      %v415 = vsub.s32 0, %v414
      %v416 = vsel %vm410, %v415, %v414
      %vm417 = vcmp.lt.s32.totalorder %v277, 0
      %v418 = vsub.s32 0, %v277
      %v419 = vsel %vm417, %v418, %v277
      %v420 = vshrl.u32 %v419, 4
      %v421 = vand.u32 %v419, 15
      %v422 = vsub.s32 0, %v421
      %v423 = vsel %vm417, %v422, %v421
      %vm424 = vcmp.lt.s32.totalorder %v278, 0
      %v425 = vsub.s32 0, %v278
      %v426 = vsel %vm424, %v425, %v278
      %v427 = vshrl.u32 %v426, 4
      %v428 = vand.u32 %v426, 15
      %v429 = vsub.s32 0, %v428
      %v430 = vsel %vm424, %v429, %v428
      %vm431 = vcmp.lt.s32.totalorder %v279, 0
      %v432 = vsub.s32 0, %v279
      %v433 = vsel %vm431, %v432, %v279
      %v434 = vshrl.u32 %v433, 4
      %v435 = vand.u32 %v433, 15
      %v436 = vsub.s32 0, %v435
      %v437 = vsel %vm431, %v436, %v435
      %vm438 = vcmp.lt.s32.totalorder %v280, 0
      %v439 = vsub.s32 0, %v280
      %v440 = vsel %vm438, %v439, %v280
      %v441 = vshrl.u32 %v440, 4
      %v442 = vand.u32 %v440, 15
      %v443 = vsub.s32 0, %v442
      %v444 = vsel %vm438, %v443, %v442
      %vm445 = vcmp.lt.s32.totalorder %v281, 0
      %v446 = vsub.s32 0, %v281
      %v447 = vsel %vm445, %v446, %v281
      %v448 = vshrl.u32 %v447, 4
      %v449 = vand.u32 %v447, 15
      %v450 = vsub.s32 0, %v449
      %v451 = vsel %vm445, %v450, %v449
      %vm452 = vcmp.lt.s32.totalorder %v282, 0
      %v453 = vsub.s32 0, %v282
      %v454 = vsel %vm452, %v453, %v282
      %v455 = vshrl.u32 %v454, 4
      %v456 = vand.u32 %v454, 15
      %v457 = vsub.s32 0, %v456
      %v458 = vsel %vm452, %v457, %v456
      %vm459 = vcmp.lt.s32.totalorder %v283, 0
      %v460 = vsub.s32 0, %v283
      %v461 = vsel %vm459, %v460, %v283
      %v462 = vshrl.u32 %v461, 4
      %v463 = vand.u32 %v461, 15
      %v464 = vsub.s32 0, %v463
      %v465 = vsel %vm459, %v464, %v463
      %vm466 = vcmp.lt.s32.totalorder %v284, 0
      %v467 = vsub.s32 0, %v284
      %v468 = vsel %vm466, %v467, %v284
      %v469 = vshrl.u32 %v468, 4
      %v470 = vand.u32 %v468, 15
      %v471 = vsub.s32 0, %v470
      %v472 = vsel %vm466, %v471, %v470
      %vm473 = vcmp.lt.s32.totalorder %v285, 0
      %v474 = vsub.s32 0, %v285
      %v475 = vsel %vm473, %v474, %v285
      %v476 = vshrl.u32 %v475, 4
      %v477 = vand.u32 %v475, 15
      %v478 = vsub.s32 0, %v477
      %v479 = vsel %vm473, %v478, %v477
      %vm480 = vcmp.lt.s32.totalorder %v286, 0
      %v481 = vsub.s32 0, %v286
      %v482 = vsel %vm480, %v481, %v286
      %v483 = vshrl.u32 %v482, 4
      %v484 = vand.u32 %v482, 15
      %v485 = vsub.s32 0, %v484
      %v486 = vsel %vm480, %v485, %v484
      %vm487 = vcmp.lt.s32.totalorder %v287, 0
      %v488 = vsub.s32 0, %v287
      %v489 = vsel %vm487, %v488, %v287
      %v490 = vshrl.u32 %v489, 4
      %v491 = vand.u32 %v489, 15
      %v492 = vsub.s32 0, %v491
      %v493 = vsel %vm487, %v492, %v491
      %vm494 = vcmp.lt.s32.totalorder %v288, 0
      %v495 = vsub.s32 0, %v288
      %v496 = vsel %vm494, %v495, %v288
      %v497 = vshrl.u32 %v496, 4
      %v498 = vand.u32 %v496, 15
      %v499 = vsub.s32 0, %v498
      %v500 = vsel %vm494, %v499, %v498
      %vm501 = vcmp.lt.s32.totalorder %v289, 0
      %v502 = vsub.s32 0, %v289
      %v503 = vsel %vm501, %v502, %v289
      %v504 = vshrl.u32 %v503, 4
      %v505 = vand.u32 %v503, 15
      %v506 = vsub.s32 0, %v505
      %v507 = vsel %vm501, %v506, %v505
      %vm508 = vcmp.lt.s32.totalorder %v290, 0
      %v509 = vsub.s32 0, %v290
      %v510 = vsel %vm508, %v509, %v290
      %v511 = vshrl.u32 %v510, 4
      %v512 = vand.u32 %v510, 15
      %v513 = vsub.s32 0, %v512
      %v514 = vsel %vm508, %v513, %v512
      %vm515 = vcmp.ne.s32.totalorder %v297, 0
      %vm516 = vcmp.ne.s32.totalorder %v304, 0
      %vm517 = vcmp.ne.s32.totalorder %v311, 0
      %vm518 = vcmp.ne.s32.totalorder %v318, 0
      %vm519 = vcmp.ne.s32.totalorder %v325, 0
      %vm520 = vcmp.ne.s32.totalorder %v332, 0
      %vm521 = vcmp.ne.s32.totalorder %v339, 0
      %vm522 = vcmp.ne.s32.totalorder %v346, 0
      %vm523 = vcmp.ne.s32.totalorder %v353, 0
      %vm524 = vcmp.ne.s32.totalorder %v360, 0
      %vm525 = vcmp.ne.s32.totalorder %v367, 0
      %vm526 = vcmp.ne.s32.totalorder %v374, 0
      %vm527 = vcmp.ne.s32.totalorder %v381, 0
      %vm528 = vcmp.ne.s32.totalorder %v388, 0
      %vm529 = vcmp.ne.s32.totalorder %v395, 0
      %vm530 = vcmp.ne.s32.totalorder %v402, 0
      %vm531 = vcmp.ne.s32.totalorder %v409, 0
      %vm532 = vcmp.ne.s32.totalorder %v416, 0
      %vm533 = vcmp.ne.s32.totalorder %v423, 0
      %vm534 = vcmp.ne.s32.totalorder %v430, 0
      %vm535 = vcmp.ne.s32.totalorder %v437, 0
      %vm536 = vcmp.ne.s32.totalorder %v444, 0
      %vm537 = vcmp.ne.s32.totalorder %v451, 0
      %vm538 = vcmp.ne.s32.totalorder %v458, 0
      %vm539 = vcmp.ne.s32.totalorder %v465, 0
      %vm540 = vcmp.ne.s32.totalorder %v472, 0
      %vm541 = vcmp.ne.s32.totalorder %v479, 0
      %vm542 = vcmp.ne.s32.totalorder %v486, 0
      %vm543 = vcmp.ne.s32.totalorder %v493, 0
      %vm544 = vcmp.ne.s32.totalorder %v500, 0
      %vm545 = vcmp.ne.s32.totalorder %v507, 0
      %vm546 = vcmp.ne.s32.totalorder %v514, 0
      %vm547 = vcmp.lt.s32.totalorder %v297, 0
      %vm548 = vcmp.lt.s32.totalorder %v304, 0
      %vm549 = vcmp.lt.s32.totalorder %v311, 0
      %vm550 = vcmp.lt.s32.totalorder %v318, 0
      %vm551 = vcmp.lt.s32.totalorder %v325, 0
      %vm552 = vcmp.lt.s32.totalorder %v332, 0
      %vm553 = vcmp.lt.s32.totalorder %v339, 0
      %vm554 = vcmp.lt.s32.totalorder %v346, 0
      %vm555 = vcmp.lt.s32.totalorder %v353, 0
      %vm556 = vcmp.lt.s32.totalorder %v360, 0
      %vm557 = vcmp.lt.s32.totalorder %v367, 0
      %vm558 = vcmp.lt.s32.totalorder %v374, 0
      %vm559 = vcmp.lt.s32.totalorder %v381, 0
      %vm560 = vcmp.lt.s32.totalorder %v388, 0
      %vm561 = vcmp.lt.s32.totalorder %v395, 0
      %vm562 = vcmp.lt.s32.totalorder %v402, 0
      %vm563 = vcmp.lt.s32.totalorder %v409, 0
      %vm564 = vcmp.lt.s32.totalorder %v416, 0
      %vm565 = vcmp.lt.s32.totalorder %v423, 0
      %vm566 = vcmp.lt.s32.totalorder %v430, 0
      %vm567 = vcmp.lt.s32.totalorder %v437, 0
      %vm568 = vcmp.lt.s32.totalorder %v444, 0
      %vm569 = vcmp.lt.s32.totalorder %v451, 0
      %vm570 = vcmp.lt.s32.totalorder %v458, 0
      %vm571 = vcmp.lt.s32.totalorder %v465, 0
      %vm572 = vcmp.lt.s32.totalorder %v472, 0
      %vm573 = vcmp.lt.s32.totalorder %v479, 0
      %vm574 = vcmp.lt.s32.totalorder %v486, 0
      %vm575 = vcmp.lt.s32.totalorder %v493, 0
      %vm576 = vcmp.lt.s32.totalorder %v500, 0
      %vm577 = vcmp.lt.s32.totalorder %v507, 0
      %vm578 = vcmp.lt.s32.totalorder %v514, 0
      %vm579 = vmand %vm547, %vm515
      %vm580 = vmand %vm548, %vm516
      %vm581 = vmand %vm549, %vm517
      %vm582 = vmand %vm550, %vm518
      %vm583 = vmand %vm551, %vm519
      %vm584 = vmand %vm552, %vm520
      %vm585 = vmand %vm553, %vm521
      %vm586 = vmand %vm554, %vm522
      %vm587 = vmand %vm555, %vm523
      %vm588 = vmand %vm556, %vm524
      %vm589 = vmand %vm557, %vm525
      %vm590 = vmand %vm558, %vm526
      %vm591 = vmand %vm559, %vm527
      %vm592 = vmand %vm560, %vm528
      %vm593 = vmand %vm561, %vm529
      %vm594 = vmand %vm562, %vm530
      %vm595 = vmand %vm563, %vm531
      %vm596 = vmand %vm564, %vm532
      %vm597 = vmand %vm565, %vm533
      %vm598 = vmand %vm566, %vm534
      %vm599 = vmand %vm567, %vm535
      %vm600 = vmand %vm568, %vm536
      %vm601 = vmand %vm569, %vm537
      %vm602 = vmand %vm570, %vm538
      %vm603 = vmand %vm571, %vm539
      %vm604 = vmand %vm572, %vm540
      %vm605 = vmand %vm573, %vm541
      %vm606 = vmand %vm574, %vm542
      %vm607 = vmand %vm575, %vm543
      %vm608 = vmand %vm576, %vm544
      %vm609 = vmand %vm577, %vm545
      %vm610 = vmand %vm578, %vm546
      %v611 = vadd.s32 %v297, 16
      %v612 = vadd.s32 %v304, 16
      %v613 = vadd.s32 %v311, 16
      %v614 = vadd.s32 %v318, 16
      %v615 = vadd.s32 %v325, 16
      %v616 = vadd.s32 %v332, 16
      %v617 = vadd.s32 %v339, 16
      %v618 = vadd.s32 %v346, 16
      %v619 = vadd.s32 %v353, 16
      %v620 = vadd.s32 %v360, 16
      %v621 = vadd.s32 %v367, 16
      %v622 = vadd.s32 %v374, 16
      %v623 = vadd.s32 %v381, 16
      %v624 = vadd.s32 %v388, 16
      %v625 = vadd.s32 %v395, 16
      %v626 = vadd.s32 %v402, 16
      %v627 = vadd.s32 %v409, 16
      %v628 = vadd.s32 %v416, 16
      %v629 = vadd.s32 %v423, 16
      %v630 = vadd.s32 %v430, 16
      %v631 = vadd.s32 %v437, 16
      %v632 = vadd.s32 %v444, 16
      %v633 = vadd.s32 %v451, 16
      %v634 = vadd.s32 %v458, 16
      %v635 = vadd.s32 %v465, 16
      %v636 = vadd.s32 %v472, 16
      %v637 = vadd.s32 %v479, 16
      %v638 = vadd.s32 %v486, 16
      %v639 = vadd.s32 %v493, 16
      %v640 = vadd.s32 %v500, 16
      %v641 = vadd.s32 %v507, 16
      %v642 = vadd.s32 %v514, 16
      %v643 = vsel %vm579, %v611, %v297
      %v644 = vsel %vm580, %v612, %v304
      %v645 = vsel %vm581, %v613, %v311
      %v646 = vsel %vm582, %v614, %v318
      %v647 = vsel %vm583, %v615, %v325
      %v648 = vsel %vm584, %v616, %v332
      %v649 = vsel %vm585, %v617, %v339
      %v650 = vsel %vm586, %v618, %v346
      %v651 = vsel %vm587, %v619, %v353
      %v652 = vsel %vm588, %v620, %v360
      %v653 = vsel %vm589, %v621, %v367
      %v654 = vsel %vm590, %v622, %v374
      %v655 = vsel %vm591, %v623, %v381
      %v656 = vsel %vm592, %v624, %v388
      %v657 = vsel %vm593, %v625, %v395
      %v658 = vsel %vm594, %v626, %v402
      %v659 = vsel %vm595, %v627, %v409
      %v660 = vsel %vm596, %v628, %v416
      %v661 = vsel %vm597, %v629, %v423
      %v662 = vsel %vm598, %v630, %v430
      %v663 = vsel %vm599, %v631, %v437
      %v664 = vsel %vm600, %v632, %v444
      %v665 = vsel %vm601, %v633, %v451
      %v666 = vsel %vm602, %v634, %v458
      %v667 = vsel %vm603, %v635, %v465
      %v668 = vsel %vm604, %v636, %v472
      %v669 = vsel %vm605, %v637, %v479
      %v670 = vsel %vm606, %v638, %v486
      %v671 = vsel %vm607, %v639, %v493
      %v672 = vsel %vm608, %v640, %v500
      %v673 = vsel %vm609, %v641, %v507
      %v674 = vsel %vm610, %v642, %v514
      %vm675 = vcmp.gt.s32.totalorder %v643, 0
      %vm676 = vcmp.gt.s32.totalorder %v644, 0
      %vm677 = vcmp.gt.s32.totalorder %v645, 0
      %vm678 = vcmp.gt.s32.totalorder %v646, 0
      %vm679 = vcmp.gt.s32.totalorder %v647, 0
      %vm680 = vcmp.gt.s32.totalorder %v648, 0
      %vm681 = vcmp.gt.s32.totalorder %v649, 0
      %vm682 = vcmp.gt.s32.totalorder %v650, 0
      %vm683 = vcmp.gt.s32.totalorder %v651, 0
      %vm684 = vcmp.gt.s32.totalorder %v652, 0
      %vm685 = vcmp.gt.s32.totalorder %v653, 0
      %vm686 = vcmp.gt.s32.totalorder %v654, 0
      %vm687 = vcmp.gt.s32.totalorder %v655, 0
      %vm688 = vcmp.gt.s32.totalorder %v656, 0
      %vm689 = vcmp.gt.s32.totalorder %v657, 0
      %vm690 = vcmp.gt.s32.totalorder %v658, 0
      %vm691 = vcmp.gt.s32.totalorder %v659, 0
      %vm692 = vcmp.gt.s32.totalorder %v660, 0
      %vm693 = vcmp.gt.s32.totalorder %v661, 0
      %vm694 = vcmp.gt.s32.totalorder %v662, 0
      %vm695 = vcmp.gt.s32.totalorder %v663, 0
      %vm696 = vcmp.gt.s32.totalorder %v664, 0
      %vm697 = vcmp.gt.s32.totalorder %v665, 0
      %vm698 = vcmp.gt.s32.totalorder %v666, 0
      %vm699 = vcmp.gt.s32.totalorder %v667, 0
      %vm700 = vcmp.gt.s32.totalorder %v668, 0
      %vm701 = vcmp.gt.s32.totalorder %v669, 0
      %vm702 = vcmp.gt.s32.totalorder %v670, 0
      %vm703 = vcmp.gt.s32.totalorder %v671, 0
      %vm704 = vcmp.gt.s32.totalorder %v672, 0
      %vm705 = vcmp.gt.s32.totalorder %v673, 0
      %vm706 = vcmp.gt.s32.totalorder %v674, 0
      %v707 = vrot.slane %v226, 7
      %v708 = vrot.slane %v227, 7
      %v709 = vrot.slane %v228, 7
      %v710 = vrot.slane %v229, 7
      %v711 = vrot.slane %v230, 7
      %v712 = vrot.slane %v231, 7
      %v713 = vrot.slane %v232, 7
      %v714 = vrot.slane %v233, 7
      %v715 = vrot.slane %v234, 7
      %v716 = vrot.slane %v235, 7
      %v717 = vrot.slane %v236, 7
      %v718 = vrot.slane %v237, 7
      %v719 = vrot.slane %v238, 7
      %v720 = vrot.slane %v239, 7
      %v721 = vrot.slane %v240, 7
      %v722 = vrot.slane %v241, 7
      %v723 = vrot.slane %v242, 7
      %v724 = vrot.slane %v243, 7
      %v725 = vrot.slane %v244, 7
      %v726 = vrot.slane %v245, 7
      %v727 = vrot.slane %v246, 7
      %v728 = vrot.slane %v247, 7
      %v729 = vrot.slane %v248, 7
      %v730 = vrot.slane %v249, 7
      %v731 = vrot.slane %v250, 7
      %v732 = vrot.slane %v251, 7
      %v733 = vrot.slane %v252, 7
      %v734 = vrot.slane %v253, 7
      %v735 = vrot.slane %v254, 7
      %v736 = vrot.slane %v255, 7
      %v737 = vrot.slane %v256, 7
      %v738 = vrot.slane %v257, 7
      %vm739 = vcmp.lt.s32.totalorder %v259, 1
      %v740 = vsel %vm739, %v737, %v738
      %v741 = vsel %vm739, %v736, %v737
      %v742 = vsel %vm739, %v735, %v736
      %v743 = vsel %vm739, %v734, %v735
      %v744 = vsel %vm739, %v733, %v734
      %v745 = vsel %vm739, %v732, %v733
      %v746 = vsel %vm739, %v731, %v732
      %v747 = vsel %vm739, %v730, %v731
      %v748 = vsel %vm739, %v729, %v730
      %v749 = vsel %vm739, %v728, %v729
      %v750 = vsel %vm739, %v727, %v728
      %v751 = vsel %vm739, %v726, %v727
      %v752 = vsel %vm739, %v725, %v726
      %v753 = vsel %vm739, %v724, %v725
      %v754 = vsel %vm739, %v723, %v724
      %v755 = vsel %vm739, %v722, %v723
      %v756 = vsel %vm739, %v721, %v722
      %v757 = vsel %vm739, %v720, %v721
      %v758 = vsel %vm739, %v719, %v720
      %v759 = vsel %vm739, %v718, %v719
      %v760 = vsel %vm739, %v717, %v718
      %v761 = vsel %vm739, %v716, %v717
      %v762 = vsel %vm739, %v715, %v716
      %v763 = vsel %vm739, %v714, %v715
      %v764 = vsel %vm739, %v713, %v714
      %v765 = vsel %vm739, %v712, %v713
      %v766 = vsel %vm739, %v711, %v712
      %v767 = vsel %vm739, %v710, %v711
      %v768 = vsel %vm739, %v709, %v710
      %v769 = vsel %vm739, %v708, %v709
      %v770 = vsel %vm739, %v707, %v708
      %v771 = vsel %vm739, %v738, %v707
      %v772 = vsel %vm675, 1, 0
      %v773 = vsel %vm676, 1, 0
      %v774 = vsel %vm677, 1, 0
      %v775 = vsel %vm678, 1, 0
      %v776 = vsel %vm679, 1, 0
      %v777 = vsel %vm680, 1, 0
      %v778 = vsel %vm681, 1, 0
      %v779 = vsel %vm682, 1, 0
      %v780 = vsel %vm683, 1, 0
      %v781 = vsel %vm684, 1, 0
      %v782 = vsel %vm685, 1, 0
      %v783 = vsel %vm686, 1, 0
      %v784 = vsel %vm687, 1, 0
      %v785 = vsel %vm688, 1, 0
      %v786 = vsel %vm689, 1, 0
      %v787 = vsel %vm690, 1, 0
      %v788 = vsel %vm691, 1, 0
      %v789 = vsel %vm692, 1, 0
      %v790 = vsel %vm693, 1, 0
      %v791 = vsel %vm694, 1, 0
      %v792 = vsel %vm695, 1, 0
      %v793 = vsel %vm696, 1, 0
      %v794 = vsel %vm697, 1, 0
      %v795 = vsel %vm698, 1, 0
      %v796 = vsel %vm699, 1, 0
      %v797 = vsel %vm700, 1, 0
      %v798 = vsel %vm701, 1, 0
      %v799 = vsel %vm702, 1, 0
      %v800 = vsel %vm703, 1, 0
      %v801 = vsel %vm704, 1, 0
      %v802 = vsel %vm705, 1, 0
      %v803 = vsel %vm706, 1, 0
      %vm804 = vcmp.eq.s32.totalorder %v772, 1
      %vm805 = vcmp.eq.s32.totalorder %v773, 1
      %vm806 = vcmp.eq.s32.totalorder %v774, 1
      %vm807 = vcmp.eq.s32.totalorder %v775, 1
      %vm808 = vcmp.eq.s32.totalorder %v776, 1
      %vm809 = vcmp.eq.s32.totalorder %v777, 1
      %vm810 = vcmp.eq.s32.totalorder %v778, 1
      %vm811 = vcmp.eq.s32.totalorder %v779, 1
      %vm812 = vcmp.eq.s32.totalorder %v780, 1
      %vm813 = vcmp.eq.s32.totalorder %v781, 1
      %vm814 = vcmp.eq.s32.totalorder %v782, 1
      %vm815 = vcmp.eq.s32.totalorder %v783, 1
      %vm816 = vcmp.eq.s32.totalorder %v784, 1
      %vm817 = vcmp.eq.s32.totalorder %v785, 1
      %vm818 = vcmp.eq.s32.totalorder %v786, 1
      %vm819 = vcmp.eq.s32.totalorder %v787, 1
      %vm820 = vcmp.eq.s32.totalorder %v788, 1
      %vm821 = vcmp.eq.s32.totalorder %v789, 1
      %vm822 = vcmp.eq.s32.totalorder %v790, 1
      %vm823 = vcmp.eq.s32.totalorder %v791, 1
      %vm824 = vcmp.eq.s32.totalorder %v792, 1
      %vm825 = vcmp.eq.s32.totalorder %v793, 1
      %vm826 = vcmp.eq.s32.totalorder %v794, 1
      %vm827 = vcmp.eq.s32.totalorder %v795, 1
      %vm828 = vcmp.eq.s32.totalorder %v796, 1
      %vm829 = vcmp.eq.s32.totalorder %v797, 1
      %vm830 = vcmp.eq.s32.totalorder %v798, 1
      %vm831 = vcmp.eq.s32.totalorder %v799, 1
      %vm832 = vcmp.eq.s32.totalorder %v800, 1
      %vm833 = vcmp.eq.s32.totalorder %v801, 1
      %vm834 = vcmp.eq.s32.totalorder %v802, 1
      %vm835 = vcmp.eq.s32.totalorder %v803, 1
      %v836 = vsel %vm804, %v771, 0.0
      %v837 = vsel %vm805, %v770, 0.0
      %v838 = vsel %vm806, %v769, 0.0
      %v839 = vsel %vm807, %v768, 0.0
      %v840 = vsel %vm808, %v767, 0.0
      %v841 = vsel %vm809, %v766, 0.0
      %v842 = vsel %vm810, %v765, 0.0
      %v843 = vsel %vm811, %v764, 0.0
      %v844 = vsel %vm812, %v763, 0.0
      %v845 = vsel %vm813, %v762, 0.0
      %v846 = vsel %vm814, %v761, 0.0
      %v847 = vsel %vm815, %v760, 0.0
      %v848 = vsel %vm816, %v759, 0.0
      %v849 = vsel %vm817, %v758, 0.0
      %v850 = vsel %vm818, %v757, 0.0
      %v851 = vsel %vm819, %v756, 0.0
      %v852 = vsel %vm820, %v755, 0.0
      %v853 = vsel %vm821, %v754, 0.0
      %v854 = vsel %vm822, %v753, 0.0
      %v855 = vsel %vm823, %v752, 0.0
      %v856 = vsel %vm824, %v751, 0.0
      %v857 = vsel %vm825, %v750, 0.0
      %v858 = vsel %vm826, %v749, 0.0
      %v859 = vsel %vm827, %v748, 0.0
      %v860 = vsel %vm828, %v747, 0.0
      %v861 = vsel %vm829, %v746, 0.0
      %v862 = vsel %vm830, %v745, 0.0
      %v863 = vsel %vm831, %v744, 0.0
      %v864 = vsel %vm832, %v743, 0.0
      %v865 = vsel %vm833, %v742, 0.0
      %v866 = vsel %vm834, %v741, 0.0
      %v867 = vsel %vm835, %v740, 0.0
      %vm868 = vcmp.lt.s32.totalorder %v643, 15
      %vm869 = vcmp.lt.s32.totalorder %v644, 15
      %vm870 = vcmp.lt.s32.totalorder %v645, 15
      %vm871 = vcmp.lt.s32.totalorder %v646, 15
      %vm872 = vcmp.lt.s32.totalorder %v647, 15
      %vm873 = vcmp.lt.s32.totalorder %v648, 15
      %vm874 = vcmp.lt.s32.totalorder %v649, 15
      %vm875 = vcmp.lt.s32.totalorder %v650, 15
      %vm876 = vcmp.lt.s32.totalorder %v651, 15
      %vm877 = vcmp.lt.s32.totalorder %v652, 15
      %vm878 = vcmp.lt.s32.totalorder %v653, 15
      %vm879 = vcmp.lt.s32.totalorder %v654, 15
      %vm880 = vcmp.lt.s32.totalorder %v655, 15
      %vm881 = vcmp.lt.s32.totalorder %v656, 15
      %vm882 = vcmp.lt.s32.totalorder %v657, 15
      %vm883 = vcmp.lt.s32.totalorder %v658, 15
      %vm884 = vcmp.lt.s32.totalorder %v659, 15
      %vm885 = vcmp.lt.s32.totalorder %v660, 15
      %vm886 = vcmp.lt.s32.totalorder %v661, 15
      %vm887 = vcmp.lt.s32.totalorder %v662, 15
      %vm888 = vcmp.lt.s32.totalorder %v663, 15
      %vm889 = vcmp.lt.s32.totalorder %v664, 15
      %vm890 = vcmp.lt.s32.totalorder %v665, 15
      %vm891 = vcmp.lt.s32.totalorder %v666, 15
      %vm892 = vcmp.lt.s32.totalorder %v667, 15
      %vm893 = vcmp.lt.s32.totalorder %v668, 15
      %vm894 = vcmp.lt.s32.totalorder %v669, 15
      %vm895 = vcmp.lt.s32.totalorder %v670, 15
      %vm896 = vcmp.lt.s32.totalorder %v671, 15
      %vm897 = vcmp.lt.s32.totalorder %v672, 15
      %vm898 = vcmp.lt.s32.totalorder %v673, 15
      %vm899 = vcmp.lt.s32.totalorder %v674, 15
      %v900 = vrot.slane %v226, 1
      %v901 = vrot.slane %v227, 1
      %v902 = vrot.slane %v228, 1
      %v903 = vrot.slane %v229, 1
      %v904 = vrot.slane %v230, 1
      %v905 = vrot.slane %v231, 1
      %v906 = vrot.slane %v232, 1
      %v907 = vrot.slane %v233, 1
      %v908 = vrot.slane %v234, 1
      %v909 = vrot.slane %v235, 1
      %v910 = vrot.slane %v236, 1
      %v911 = vrot.slane %v237, 1
      %v912 = vrot.slane %v238, 1
      %v913 = vrot.slane %v239, 1
      %v914 = vrot.slane %v240, 1
      %v915 = vrot.slane %v241, 1
      %v916 = vrot.slane %v242, 1
      %v917 = vrot.slane %v243, 1
      %v918 = vrot.slane %v244, 1
      %v919 = vrot.slane %v245, 1
      %v920 = vrot.slane %v246, 1
      %v921 = vrot.slane %v247, 1
      %v922 = vrot.slane %v248, 1
      %v923 = vrot.slane %v249, 1
      %v924 = vrot.slane %v250, 1
      %v925 = vrot.slane %v251, 1
      %v926 = vrot.slane %v252, 1
      %v927 = vrot.slane %v253, 1
      %v928 = vrot.slane %v254, 1
      %v929 = vrot.slane %v255, 1
      %v930 = vrot.slane %v256, 1
      %v931 = vrot.slane %v257, 1
      %vm932 = vcmp.lt.s32.totalorder %v259, 7
      %v933 = vsel %vm932, %v930, %v931
      %v934 = vsel %vm932, %v929, %v930
      %v935 = vsel %vm932, %v928, %v929
      %v936 = vsel %vm932, %v927, %v928
      %v937 = vsel %vm932, %v926, %v927
      %v938 = vsel %vm932, %v925, %v926
      %v939 = vsel %vm932, %v924, %v925
      %v940 = vsel %vm932, %v923, %v924
      %v941 = vsel %vm932, %v922, %v923
      %v942 = vsel %vm932, %v921, %v922
      %v943 = vsel %vm932, %v920, %v921
      %v944 = vsel %vm932, %v919, %v920
      %v945 = vsel %vm932, %v918, %v919
      %v946 = vsel %vm932, %v917, %v918
      %v947 = vsel %vm932, %v916, %v917
      %v948 = vsel %vm932, %v915, %v916
      %v949 = vsel %vm932, %v914, %v915
      %v950 = vsel %vm932, %v913, %v914
      %v951 = vsel %vm932, %v912, %v913
      %v952 = vsel %vm932, %v911, %v912
      %v953 = vsel %vm932, %v910, %v911
      %v954 = vsel %vm932, %v909, %v910
      %v955 = vsel %vm932, %v908, %v909
      %v956 = vsel %vm932, %v907, %v908
      %v957 = vsel %vm932, %v906, %v907
      %v958 = vsel %vm932, %v905, %v906
      %v959 = vsel %vm932, %v904, %v905
      %v960 = vsel %vm932, %v903, %v904
      %v961 = vsel %vm932, %v902, %v903
      %v962 = vsel %vm932, %v901, %v902
      %v963 = vsel %vm932, %v900, %v901
      %v964 = vsel %vm932, %v931, %v900
      %v965 = vsel %vm868, 1, 0
      %v966 = vsel %vm869, 1, 0
      %v967 = vsel %vm870, 1, 0
      %v968 = vsel %vm871, 1, 0
      %v969 = vsel %vm872, 1, 0
      %v970 = vsel %vm873, 1, 0
      %v971 = vsel %vm874, 1, 0
      %v972 = vsel %vm875, 1, 0
      %v973 = vsel %vm876, 1, 0
      %v974 = vsel %vm877, 1, 0
      %v975 = vsel %vm878, 1, 0
      %v976 = vsel %vm879, 1, 0
      %v977 = vsel %vm880, 1, 0
      %v978 = vsel %vm881, 1, 0
      %v979 = vsel %vm882, 1, 0
      %v980 = vsel %vm883, 1, 0
      %v981 = vsel %vm884, 1, 0
      %v982 = vsel %vm885, 1, 0
      %v983 = vsel %vm886, 1, 0
      %v984 = vsel %vm887, 1, 0
      %v985 = vsel %vm888, 1, 0
      %v986 = vsel %vm889, 1, 0
      %v987 = vsel %vm890, 1, 0
      %v988 = vsel %vm891, 1, 0
      %v989 = vsel %vm892, 1, 0
      %v990 = vsel %vm893, 1, 0
      %v991 = vsel %vm894, 1, 0
      %v992 = vsel %vm895, 1, 0
      %v993 = vsel %vm896, 1, 0
      %v994 = vsel %vm897, 1, 0
      %v995 = vsel %vm898, 1, 0
      %v996 = vsel %vm899, 1, 0
      %vm997 = vcmp.eq.s32.totalorder %v965, 1
      %vm998 = vcmp.eq.s32.totalorder %v966, 1
      %vm999 = vcmp.eq.s32.totalorder %v967, 1
      %vm1000 = vcmp.eq.s32.totalorder %v968, 1
      %vm1001 = vcmp.eq.s32.totalorder %v969, 1
      %vm1002 = vcmp.eq.s32.totalorder %v970, 1
      %vm1003 = vcmp.eq.s32.totalorder %v971, 1
      %vm1004 = vcmp.eq.s32.totalorder %v972, 1
      %vm1005 = vcmp.eq.s32.totalorder %v973, 1
      %vm1006 = vcmp.eq.s32.totalorder %v974, 1
      %vm1007 = vcmp.eq.s32.totalorder %v975, 1
      %vm1008 = vcmp.eq.s32.totalorder %v976, 1
      %vm1009 = vcmp.eq.s32.totalorder %v977, 1
      %vm1010 = vcmp.eq.s32.totalorder %v978, 1
      %vm1011 = vcmp.eq.s32.totalorder %v979, 1
      %vm1012 = vcmp.eq.s32.totalorder %v980, 1
      %vm1013 = vcmp.eq.s32.totalorder %v981, 1
      %vm1014 = vcmp.eq.s32.totalorder %v982, 1
      %vm1015 = vcmp.eq.s32.totalorder %v983, 1
      %vm1016 = vcmp.eq.s32.totalorder %v984, 1
      %vm1017 = vcmp.eq.s32.totalorder %v985, 1
      %vm1018 = vcmp.eq.s32.totalorder %v986, 1
      %vm1019 = vcmp.eq.s32.totalorder %v987, 1
      %vm1020 = vcmp.eq.s32.totalorder %v988, 1
      %vm1021 = vcmp.eq.s32.totalorder %v989, 1
      %vm1022 = vcmp.eq.s32.totalorder %v990, 1
      %vm1023 = vcmp.eq.s32.totalorder %v991, 1
      %vm1024 = vcmp.eq.s32.totalorder %v992, 1
      %vm1025 = vcmp.eq.s32.totalorder %v993, 1
      %vm1026 = vcmp.eq.s32.totalorder %v994, 1
      %vm1027 = vcmp.eq.s32.totalorder %v995, 1
      %vm1028 = vcmp.eq.s32.totalorder %v996, 1
      %v1029 = vsel %vm997, %v963, 0.0
      %v1030 = vsel %vm998, %v962, 0.0
      %v1031 = vsel %vm999, %v961, 0.0
      %v1032 = vsel %vm1000, %v960, 0.0
      %v1033 = vsel %vm1001, %v959, 0.0
      %v1034 = vsel %vm1002, %v958, 0.0
      %v1035 = vsel %vm1003, %v957, 0.0
      %v1036 = vsel %vm1004, %v956, 0.0
      %v1037 = vsel %vm1005, %v955, 0.0
      %v1038 = vsel %vm1006, %v954, 0.0
      %v1039 = vsel %vm1007, %v953, 0.0
      %v1040 = vsel %vm1008, %v952, 0.0
      %v1041 = vsel %vm1009, %v951, 0.0
      %v1042 = vsel %vm1010, %v950, 0.0
      %v1043 = vsel %vm1011, %v949, 0.0
      %v1044 = vsel %vm1012, %v948, 0.0
      %v1045 = vsel %vm1013, %v947, 0.0
      %v1046 = vsel %vm1014, %v946, 0.0
      %v1047 = vsel %vm1015, %v945, 0.0
      %v1048 = vsel %vm1016, %v944, 0.0
      %v1049 = vsel %vm1017, %v943, 0.0
      %v1050 = vsel %vm1018, %v942, 0.0
      %v1051 = vsel %vm1019, %v941, 0.0
      %v1052 = vsel %vm1020, %v940, 0.0
      %v1053 = vsel %vm1021, %v939, 0.0
      %v1054 = vsel %vm1022, %v938, 0.0
      %v1055 = vsel %vm1023, %v937, 0.0
      %v1056 = vsel %vm1024, %v936, 0.0
      %v1057 = vsel %vm1025, %v935, 0.0
      %v1058 = vsel %vm1026, %v934, 0.0
      %v1059 = vsel %vm1027, %v933, 0.0
      %v1060 = vsel %vm1028, %v964, 0.0
      %1093 = vrot.lane.b32.xlu0 %v226, 4
      %v1094 = vpop.permute.xlu0 %1093
      %1095 = vrot.lane.b32.xlu0 %v227, 4
      %v1096 = vpop.permute.xlu0 %1095
      %1097 = vrot.lane.b32.xlu0 %v228, 4
      %v1098 = vpop.permute.xlu0 %1097
      %1099 = vrot.lane.b32.xlu0 %v229, 4
      %v1100 = vpop.permute.xlu0 %1099
      %1101 = vrot.lane.b32.xlu0 %v230, 4
      %v1102 = vpop.permute.xlu0 %1101
      %1103 = vrot.lane.b32.xlu0 %v231, 4
      %v1104 = vpop.permute.xlu0 %1103
      %1105 = vrot.lane.b32.xlu0 %v232, 4
      %v1106 = vpop.permute.xlu0 %1105
      %1107 = vrot.lane.b32.xlu0 %v233, 4
      %v1108 = vpop.permute.xlu0 %1107
      %1109 = vrot.lane.b32.xlu0 %v234, 4
      %v1110 = vpop.permute.xlu0 %1109
      %1111 = vrot.lane.b32.xlu0 %v235, 4
      %v1112 = vpop.permute.xlu0 %1111
      %1113 = vrot.lane.b32.xlu0 %v236, 4
      %v1114 = vpop.permute.xlu0 %1113
      %1115 = vrot.lane.b32.xlu0 %v237, 4
      %v1116 = vpop.permute.xlu0 %1115
      %1117 = vrot.lane.b32.xlu0 %v238, 4
      %v1118 = vpop.permute.xlu0 %1117
      %1119 = vrot.lane.b32.xlu0 %v239, 4
      %v1120 = vpop.permute.xlu0 %1119
      %1121 = vrot.lane.b32.xlu0 %v240, 4
      %v1122 = vpop.permute.xlu0 %1121
      %1123 = vrot.lane.b32.xlu0 %v241, 4
      %v1124 = vpop.permute.xlu0 %1123
      %1125 = vrot.lane.b32.xlu0 %v242, 4
      %v1126 = vpop.permute.xlu0 %1125
      %1127 = vrot.lane.b32.xlu0 %v243, 4
      %v1128 = vpop.permute.xlu0 %1127
      %1129 = vrot.lane.b32.xlu0 %v244, 4
      %v1130 = vpop.permute.xlu0 %1129
      %1131 = vrot.lane.b32.xlu0 %v245, 4
      %v1132 = vpop.permute.xlu0 %1131
      %1133 = vrot.lane.b32.xlu0 %v246, 4
      %v1134 = vpop.permute.xlu0 %1133
      %1135 = vrot.lane.b32.xlu0 %v247, 4
      %v1136 = vpop.permute.xlu0 %1135
      %1137 = vrot.lane.b32.xlu0 %v248, 4
      %v1138 = vpop.permute.xlu0 %1137
      %1139 = vrot.lane.b32.xlu0 %v249, 4
      %v1140 = vpop.permute.xlu0 %1139
      %1141 = vrot.lane.b32.xlu0 %v250, 4
      %v1142 = vpop.permute.xlu0 %1141
      %1143 = vrot.lane.b32.xlu0 %v251, 4
      %v1144 = vpop.permute.xlu0 %1143
      %1145 = vrot.lane.b32.xlu0 %v252, 4
      %v1146 = vpop.permute.xlu0 %1145
      %1147 = vrot.lane.b32.xlu0 %v253, 4
      %v1148 = vpop.permute.xlu0 %1147
      %1149 = vrot.lane.b32.xlu0 %v254, 4
      %v1150 = vpop.permute.xlu0 %1149
      %1151 = vrot.lane.b32.xlu0 %v255, 4
      %v1152 = vpop.permute.xlu0 %1151
      %1153 = vrot.lane.b32.xlu0 %v256, 4
      %v1154 = vpop.permute.xlu0 %1153
      %1155 = vrot.lane.b32.xlu0 %v257, 4
      %v1156 = vpop.permute.xlu0 %1155
      %1221 = vrot.lane.b32.xlu0 %v1029, 8
      %v1222 = vpop.permute.xlu0 %1221
      %1223 = vrot.lane.b32.xlu0 %v1030, 8
      %v1224 = vpop.permute.xlu0 %1223
      %1225 = vrot.lane.b32.xlu0 %v1031, 8
      %v1226 = vpop.permute.xlu0 %1225
      %1227 = vrot.lane.b32.xlu0 %v1032, 8
      %v1228 = vpop.permute.xlu0 %1227
      %1229 = vrot.lane.b32.xlu0 %v1033, 8
      %v1230 = vpop.permute.xlu0 %1229
      %1231 = vrot.lane.b32.xlu0 %v1034, 8
      %v1232 = vpop.permute.xlu0 %1231
      %1233 = vrot.lane.b32.xlu0 %v1035, 8
      %v1234 = vpop.permute.xlu0 %1233
      %1235 = vrot.lane.b32.xlu0 %v1036, 8
      %v1236 = vpop.permute.xlu0 %1235
      %1237 = vrot.lane.b32.xlu0 %v1037, 8
      %v1238 = vpop.permute.xlu0 %1237
      %1239 = vrot.lane.b32.xlu0 %v1038, 8
      %v1240 = vpop.permute.xlu0 %1239
      %1241 = vrot.lane.b32.xlu0 %v1039, 8
      %v1242 = vpop.permute.xlu0 %1241
      %1243 = vrot.lane.b32.xlu0 %v1040, 8
      %v1244 = vpop.permute.xlu0 %1243
      %1245 = vrot.lane.b32.xlu0 %v1041, 8
      %v1246 = vpop.permute.xlu0 %1245
      %1247 = vrot.lane.b32.xlu0 %v1042, 8
      %v1248 = vpop.permute.xlu0 %1247
      %1249 = vrot.lane.b32.xlu0 %v1043, 8
      %v1250 = vpop.permute.xlu0 %1249
      %1251 = vrot.lane.b32.xlu0 %v1044, 8
      %v1252 = vpop.permute.xlu0 %1251
      %1253 = vrot.lane.b32.xlu0 %v1045, 8
      %v1254 = vpop.permute.xlu0 %1253
      %1255 = vrot.lane.b32.xlu0 %v1046, 8
      %v1256 = vpop.permute.xlu0 %1255
      %1257 = vrot.lane.b32.xlu0 %v1047, 8
      %v1258 = vpop.permute.xlu0 %1257
      %1259 = vrot.lane.b32.xlu0 %v1048, 8
      %v1260 = vpop.permute.xlu0 %1259
      %1261 = vrot.lane.b32.xlu0 %v1049, 8
      %v1262 = vpop.permute.xlu0 %1261
      %1263 = vrot.lane.b32.xlu0 %v1050, 8
      %v1264 = vpop.permute.xlu0 %1263
      %1265 = vrot.lane.b32.xlu0 %v1051, 8
      %v1266 = vpop.permute.xlu0 %1265
      %1267 = vrot.lane.b32.xlu0 %v1052, 8
      %v1268 = vpop.permute.xlu0 %1267
      %1269 = vrot.lane.b32.xlu0 %v1053, 8
      %v1270 = vpop.permute.xlu0 %1269
      %1271 = vrot.lane.b32.xlu0 %v1054, 8
      %v1272 = vpop.permute.xlu0 %1271
      %1273 = vrot.lane.b32.xlu0 %v1055, 8
      %v1274 = vpop.permute.xlu0 %1273
      %1275 = vrot.lane.b32.xlu0 %v1056, 8
      %v1276 = vpop.permute.xlu0 %1275
      %1277 = vrot.lane.b32.xlu0 %v1057, 8
      %v1278 = vpop.permute.xlu0 %1277
      %1279 = vrot.lane.b32.xlu0 %v1058, 8
      %v1280 = vpop.permute.xlu0 %1279
      %1281 = vrot.lane.b32.xlu0 %v1059, 8
      %v1282 = vpop.permute.xlu0 %1281
      %1283 = vrot.lane.b32.xlu0 %v1060, 8
      %v1284 = vpop.permute.xlu0 %1283
      %vm1317 = vcmask 31744
      %v1318 = vsel %vm1317, %v836, %v1094
      %v1319 = vsel %vm1317, %v837, %v1096
      %v1320 = vsel %vm1317, %v838, %v1098
      %v1321 = vsel %vm1317, %v839, %v1100
      %v1322 = vsel %vm1317, %v840, %v1102
      %v1323 = vsel %vm1317, %v841, %v1104
      %v1324 = vsel %vm1317, %v842, %v1106
      %v1325 = vsel %vm1317, %v843, %v1108
      %v1326 = vsel %vm1317, %v844, %v1110
      %v1327 = vsel %vm1317, %v845, %v1112
      %v1328 = vsel %vm1317, %v846, %v1114
      %v1329 = vsel %vm1317, %v847, %v1116
      %v1330 = vsel %vm1317, %v848, %v1118
      %v1331 = vsel %vm1317, %v849, %v1120
      %v1332 = vsel %vm1317, %v850, %v1122
      %v1333 = vsel %vm1317, %v851, %v1124
      %v1334 = vsel %vm1317, %v852, %v1126
      %v1335 = vsel %vm1317, %v853, %v1128
      %v1336 = vsel %vm1317, %v854, %v1130
      %v1337 = vsel %vm1317, %v855, %v1132
      %v1338 = vsel %vm1317, %v856, %v1134
      %v1339 = vsel %vm1317, %v857, %v1136
      %v1340 = vsel %vm1317, %v858, %v1138
      %v1341 = vsel %vm1317, %v859, %v1140
      %v1342 = vsel %vm1317, %v860, %v1142
      %v1343 = vsel %vm1317, %v861, %v1144
      %v1344 = vsel %vm1317, %v862, %v1146
      %v1345 = vsel %vm1317, %v863, %v1148
      %v1346 = vsel %vm1317, %v864, %v1150
      %v1347 = vsel %vm1317, %v865, %v1152
      %v1348 = vsel %vm1317, %v866, %v1154
      %v1349 = vsel %vm1317, %v867, %v1156
      %vm1350 = vcmask 64512
      %v1351 = vsel %vm1350, %v1318, %v1222
      %v1352 = vsel %vm1350, %v1319, %v1224
      %v1353 = vsel %vm1350, %v1320, %v1226
      %v1354 = vsel %vm1350, %v1321, %v1228
      %v1355 = vsel %vm1350, %v1322, %v1230
      %v1356 = vsel %vm1350, %v1323, %v1232
      %v1357 = vsel %vm1350, %v1324, %v1234
      %v1358 = vsel %vm1350, %v1325, %v1236
      %v1359 = vsel %vm1350, %v1326, %v1238
      %v1360 = vsel %vm1350, %v1327, %v1240
      %v1361 = vsel %vm1350, %v1328, %v1242
      %v1362 = vsel %vm1350, %v1329, %v1244
      %v1363 = vsel %vm1350, %v1330, %v1246
      %v1364 = vsel %vm1350, %v1331, %v1248
      %v1365 = vsel %vm1350, %v1332, %v1250
      %v1366 = vsel %vm1350, %v1333, %v1252
      %v1367 = vsel %vm1350, %v1334, %v1254
      %v1368 = vsel %vm1350, %v1335, %v1256
      %v1369 = vsel %vm1350, %v1336, %v1258
      %v1370 = vsel %vm1350, %v1337, %v1260
      %v1371 = vsel %vm1350, %v1338, %v1262
      %v1372 = vsel %vm1350, %v1339, %v1264
      %v1373 = vsel %vm1350, %v1340, %v1266
      %v1374 = vsel %vm1350, %v1341, %v1268
      %v1375 = vsel %vm1350, %v1342, %v1270
      %v1376 = vsel %vm1350, %v1343, %v1272
      %v1377 = vsel %vm1350, %v1344, %v1274
      %v1378 = vsel %vm1350, %v1345, %v1276
      %v1379 = vsel %vm1350, %v1346, %v1278
      %v1380 = vsel %vm1350, %v1347, %v1280
      %v1381 = vsel %vm1350, %v1348, %v1282
      %v1382 = vsel %vm1350, %v1349, %v1284
      %vm1383 = vcmp.ge.s32.totalorder %v259, 16
      %vm1384 = vcmp.ge.s32.totalorder %v260, 16
      %vm1385 = vcmp.ge.s32.totalorder %v261, 16
      %vm1386 = vcmp.ge.s32.totalorder %v262, 16
      %vm1387 = vcmp.ge.s32.totalorder %v263, 16
      %vm1388 = vcmp.ge.s32.totalorder %v264, 16
      %vm1389 = vcmp.ge.s32.totalorder %v265, 16
      %vm1390 = vcmp.ge.s32.totalorder %v266, 16
      %vm1391 = vcmp.ge.s32.totalorder %v267, 16
      %vm1392 = vcmp.ge.s32.totalorder %v268, 16
      %vm1393 = vcmp.ge.s32.totalorder %v269, 16
      %vm1394 = vcmp.ge.s32.totalorder %v270, 16
      %vm1395 = vcmp.ge.s32.totalorder %v271, 16
      %vm1396 = vcmp.ge.s32.totalorder %v272, 16
      %vm1397 = vcmp.ge.s32.totalorder %v273, 16
      %vm1398 = vcmp.ge.s32.totalorder %v274, 16
      %vm1399 = vcmp.ge.s32.totalorder %v275, 16
      %vm1400 = vcmp.ge.s32.totalorder %v276, 16
      %vm1401 = vcmp.ge.s32.totalorder %v277, 16
      %vm1402 = vcmp.ge.s32.totalorder %v278, 16
      %vm1403 = vcmp.ge.s32.totalorder %v279, 16
      %vm1404 = vcmp.ge.s32.totalorder %v280, 16
      %vm1405 = vcmp.ge.s32.totalorder %v281, 16
      %vm1406 = vcmp.ge.s32.totalorder %v282, 16
      %vm1407 = vcmp.ge.s32.totalorder %v283, 16
      %vm1408 = vcmp.ge.s32.totalorder %v284, 16
      %vm1409 = vcmp.ge.s32.totalorder %v285, 16
      %vm1410 = vcmp.ge.s32.totalorder %v286, 16
      %vm1411 = vcmp.ge.s32.totalorder %v287, 16
      %vm1412 = vcmp.ge.s32.totalorder %v288, 16
      %vm1413 = vcmp.ge.s32.totalorder %v289, 16
      %vm1414 = vcmp.ge.s32.totalorder %v290, 16
      %v1415 = vsel %vm1383, 1, 0
      %v1416 = vsel %vm1384, 1, 0
      %v1417 = vsel %vm1385, 1, 0
      %v1418 = vsel %vm1386, 1, 0
      %v1419 = vsel %vm1387, 1, 0
      %v1420 = vsel %vm1388, 1, 0
      %v1421 = vsel %vm1389, 1, 0
      %v1422 = vsel %vm1390, 1, 0
      %v1423 = vsel %vm1391, 1, 0
      %v1424 = vsel %vm1392, 1, 0
      %v1425 = vsel %vm1393, 1, 0
      %v1426 = vsel %vm1394, 1, 0
      %v1427 = vsel %vm1395, 1, 0
      %v1428 = vsel %vm1396, 1, 0
      %v1429 = vsel %vm1397, 1, 0
      %v1430 = vsel %vm1398, 1, 0
      %v1431 = vsel %vm1399, 1, 0
      %v1432 = vsel %vm1400, 1, 0
      %v1433 = vsel %vm1401, 1, 0
      %v1434 = vsel %vm1402, 1, 0
      %v1435 = vsel %vm1403, 1, 0
      %v1436 = vsel %vm1404, 1, 0
      %v1437 = vsel %vm1405, 1, 0
      %v1438 = vsel %vm1406, 1, 0
      %v1439 = vsel %vm1407, 1, 0
      %v1440 = vsel %vm1408, 1, 0
      %v1441 = vsel %vm1409, 1, 0
      %v1442 = vsel %vm1410, 1, 0
      %v1443 = vsel %vm1411, 1, 0
      %v1444 = vsel %vm1412, 1, 0
      %v1445 = vsel %vm1413, 1, 0
      %v1446 = vsel %vm1414, 1, 0
      %vm1447 = vcmp.eq.s32.totalorder %v1415, 1
      %vm1448 = vcmp.eq.s32.totalorder %v1416, 1
      %vm1449 = vcmp.eq.s32.totalorder %v1417, 1
      %vm1450 = vcmp.eq.s32.totalorder %v1418, 1
      %vm1451 = vcmp.eq.s32.totalorder %v1419, 1
      %vm1452 = vcmp.eq.s32.totalorder %v1420, 1
      %vm1453 = vcmp.eq.s32.totalorder %v1421, 1
      %vm1454 = vcmp.eq.s32.totalorder %v1422, 1
      %vm1455 = vcmp.eq.s32.totalorder %v1423, 1
      %vm1456 = vcmp.eq.s32.totalorder %v1424, 1
      %vm1457 = vcmp.eq.s32.totalorder %v1425, 1
      %vm1458 = vcmp.eq.s32.totalorder %v1426, 1
      %vm1459 = vcmp.eq.s32.totalorder %v1427, 1
      %vm1460 = vcmp.eq.s32.totalorder %v1428, 1
      %vm1461 = vcmp.eq.s32.totalorder %v1429, 1
      %vm1462 = vcmp.eq.s32.totalorder %v1430, 1
      %vm1463 = vcmp.eq.s32.totalorder %v1431, 1
      %vm1464 = vcmp.eq.s32.totalorder %v1432, 1
      %vm1465 = vcmp.eq.s32.totalorder %v1433, 1
      %vm1466 = vcmp.eq.s32.totalorder %v1434, 1
      %vm1467 = vcmp.eq.s32.totalorder %v1435, 1
      %vm1468 = vcmp.eq.s32.totalorder %v1436, 1
      %vm1469 = vcmp.eq.s32.totalorder %v1437, 1
      %vm1470 = vcmp.eq.s32.totalorder %v1438, 1
      %vm1471 = vcmp.eq.s32.totalorder %v1439, 1
      %vm1472 = vcmp.eq.s32.totalorder %v1440, 1
      %vm1473 = vcmp.eq.s32.totalorder %v1441, 1
      %vm1474 = vcmp.eq.s32.totalorder %v1442, 1
      %vm1475 = vcmp.eq.s32.totalorder %v1443, 1
      %vm1476 = vcmp.eq.s32.totalorder %v1444, 1
      %vm1477 = vcmp.eq.s32.totalorder %v1445, 1
      %vm1478 = vcmp.eq.s32.totalorder %v1446, 1
      %v1479 = vsel %vm1447, %v1381, 0.0
      %v1480 = vsel %vm1448, %v1382, 0.0
      %v1481 = vsel %vm1449, %v1351, 0.0
      %v1482 = vsel %vm1450, %v1352, 0.0
      %v1483 = vsel %vm1451, %v1353, 0.0
      %v1484 = vsel %vm1452, %v1354, 0.0
      %v1485 = vsel %vm1453, %v1355, 0.0
      %v1486 = vsel %vm1454, %v1356, 0.0
      %v1487 = vsel %vm1455, %v1357, 0.0
      %v1488 = vsel %vm1456, %v1358, 0.0
      %v1489 = vsel %vm1457, %v1359, 0.0
      %v1490 = vsel %vm1458, %v1360, 0.0
      %v1491 = vsel %vm1459, %v1361, 0.0
      %v1492 = vsel %vm1460, %v1362, 0.0
      %v1493 = vsel %vm1461, %v1363, 0.0
      %v1494 = vsel %vm1462, %v1364, 0.0
      %v1495 = vsel %vm1463, %v1365, 0.0
      %v1496 = vsel %vm1464, %v1366, 0.0
      %v1497 = vsel %vm1465, %v1367, 0.0
      %v1498 = vsel %vm1466, %v1368, 0.0
      %v1499 = vsel %vm1467, %v1369, 0.0
      %v1500 = vsel %vm1468, %v1370, 0.0
      %v1501 = vsel %vm1469, %v1371, 0.0
      %v1502 = vsel %vm1470, %v1372, 0.0
      %v1503 = vsel %vm1471, %v1373, 0.0
      %v1504 = vsel %vm1472, %v1374, 0.0
      %v1505 = vsel %vm1473, %v1375, 0.0
      %v1506 = vsel %vm1474, %v1376, 0.0
      %v1507 = vsel %vm1475, %v1377, 0.0
      %v1508 = vsel %vm1476, %v1378, 0.0
      %v1509 = vsel %vm1477, %v1379, 0.0
      %v1510 = vsel %vm1478, %v1380, 0.0
      %vm1511 = vcmp.lt.s32.totalorder %v259, 240
      %vm1512 = vcmp.lt.s32.totalorder %v260, 240
      %vm1513 = vcmp.lt.s32.totalorder %v261, 240
      %vm1514 = vcmp.lt.s32.totalorder %v262, 240
      %vm1515 = vcmp.lt.s32.totalorder %v263, 240
      %vm1516 = vcmp.lt.s32.totalorder %v264, 240
      %vm1517 = vcmp.lt.s32.totalorder %v265, 240
      %vm1518 = vcmp.lt.s32.totalorder %v266, 240
      %vm1519 = vcmp.lt.s32.totalorder %v267, 240
      %vm1520 = vcmp.lt.s32.totalorder %v268, 240
      %vm1521 = vcmp.lt.s32.totalorder %v269, 240
      %vm1522 = vcmp.lt.s32.totalorder %v270, 240
      %vm1523 = vcmp.lt.s32.totalorder %v271, 240
      %vm1524 = vcmp.lt.s32.totalorder %v272, 240
      %vm1525 = vcmp.lt.s32.totalorder %v273, 240
      %vm1526 = vcmp.lt.s32.totalorder %v274, 240
      %vm1527 = vcmp.lt.s32.totalorder %v275, 240
      %vm1528 = vcmp.lt.s32.totalorder %v276, 240
      %vm1529 = vcmp.lt.s32.totalorder %v277, 240
      %vm1530 = vcmp.lt.s32.totalorder %v278, 240
      %vm1531 = vcmp.lt.s32.totalorder %v279, 240
      %vm1532 = vcmp.lt.s32.totalorder %v280, 240
      %vm1533 = vcmp.lt.s32.totalorder %v281, 240
      %vm1534 = vcmp.lt.s32.totalorder %v282, 240
      %vm1535 = vcmp.lt.s32.totalorder %v283, 240
      %vm1536 = vcmp.lt.s32.totalorder %v284, 240
      %vm1537 = vcmp.lt.s32.totalorder %v285, 240
      %vm1538 = vcmp.lt.s32.totalorder %v286, 240
      %vm1539 = vcmp.lt.s32.totalorder %v287, 240
      %vm1540 = vcmp.lt.s32.totalorder %v288, 240
      %vm1541 = vcmp.lt.s32.totalorder %v289, 240
      %vm1542 = vcmp.lt.s32.totalorder %v290, 240
      %v1543 = vsel %vm1511, 1, 0
      %v1544 = vsel %vm1512, 1, 0
      %v1545 = vsel %vm1513, 1, 0
      %v1546 = vsel %vm1514, 1, 0
      %v1547 = vsel %vm1515, 1, 0
      %v1548 = vsel %vm1516, 1, 0
      %v1549 = vsel %vm1517, 1, 0
      %v1550 = vsel %vm1518, 1, 0
      %v1551 = vsel %vm1519, 1, 0
      %v1552 = vsel %vm1520, 1, 0
      %v1553 = vsel %vm1521, 1, 0
      %v1554 = vsel %vm1522, 1, 0
      %v1555 = vsel %vm1523, 1, 0
      %v1556 = vsel %vm1524, 1, 0
      %v1557 = vsel %vm1525, 1, 0
      %v1558 = vsel %vm1526, 1, 0
      %v1559 = vsel %vm1527, 1, 0
      %v1560 = vsel %vm1528, 1, 0
      %v1561 = vsel %vm1529, 1, 0
      %v1562 = vsel %vm1530, 1, 0
      %v1563 = vsel %vm1531, 1, 0
      %v1564 = vsel %vm1532, 1, 0
      %v1565 = vsel %vm1533, 1, 0
      %v1566 = vsel %vm1534, 1, 0
      %v1567 = vsel %vm1535, 1, 0
      %v1568 = vsel %vm1536, 1, 0
      %v1569 = vsel %vm1537, 1, 0
      %v1570 = vsel %vm1538, 1, 0
      %v1571 = vsel %vm1539, 1, 0
      %v1572 = vsel %vm1540, 1, 0
      %v1573 = vsel %vm1541, 1, 0
      %v1574 = vsel %vm1542, 1, 0
      %vm1575 = vcmp.eq.s32.totalorder %v1543, 1
      %vm1576 = vcmp.eq.s32.totalorder %v1544, 1
      %vm1577 = vcmp.eq.s32.totalorder %v1545, 1
      %vm1578 = vcmp.eq.s32.totalorder %v1546, 1
      %vm1579 = vcmp.eq.s32.totalorder %v1547, 1
      %vm1580 = vcmp.eq.s32.totalorder %v1548, 1
      %vm1581 = vcmp.eq.s32.totalorder %v1549, 1
      %vm1582 = vcmp.eq.s32.totalorder %v1550, 1
      %vm1583 = vcmp.eq.s32.totalorder %v1551, 1
      %vm1584 = vcmp.eq.s32.totalorder %v1552, 1
      %vm1585 = vcmp.eq.s32.totalorder %v1553, 1
      %vm1586 = vcmp.eq.s32.totalorder %v1554, 1
      %vm1587 = vcmp.eq.s32.totalorder %v1555, 1
      %vm1588 = vcmp.eq.s32.totalorder %v1556, 1
      %vm1589 = vcmp.eq.s32.totalorder %v1557, 1
      %vm1590 = vcmp.eq.s32.totalorder %v1558, 1
      %vm1591 = vcmp.eq.s32.totalorder %v1559, 1
      %vm1592 = vcmp.eq.s32.totalorder %v1560, 1
      %vm1593 = vcmp.eq.s32.totalorder %v1561, 1
      %vm1594 = vcmp.eq.s32.totalorder %v1562, 1
      %vm1595 = vcmp.eq.s32.totalorder %v1563, 1
      %vm1596 = vcmp.eq.s32.totalorder %v1564, 1
      %vm1597 = vcmp.eq.s32.totalorder %v1565, 1
      %vm1598 = vcmp.eq.s32.totalorder %v1566, 1
      %vm1599 = vcmp.eq.s32.totalorder %v1567, 1
      %vm1600 = vcmp.eq.s32.totalorder %v1568, 1
      %vm1601 = vcmp.eq.s32.totalorder %v1569, 1
      %vm1602 = vcmp.eq.s32.totalorder %v1570, 1
      %vm1603 = vcmp.eq.s32.totalorder %v1571, 1
      %vm1604 = vcmp.eq.s32.totalorder %v1572, 1
      %vm1605 = vcmp.eq.s32.totalorder %v1573, 1
      %vm1606 = vcmp.eq.s32.totalorder %v1574, 1
      %v1607 = vsel %vm1575, %v1353, 0.0
      %v1608 = vsel %vm1576, %v1354, 0.0
      %v1609 = vsel %vm1577, %v1355, 0.0
      %v1610 = vsel %vm1578, %v1356, 0.0
      %v1611 = vsel %vm1579, %v1357, 0.0
      %v1612 = vsel %vm1580, %v1358, 0.0
      %v1613 = vsel %vm1581, %v1359, 0.0
      %v1614 = vsel %vm1582, %v1360, 0.0
      %v1615 = vsel %vm1583, %v1361, 0.0
      %v1616 = vsel %vm1584, %v1362, 0.0
      %v1617 = vsel %vm1585, %v1363, 0.0
      %v1618 = vsel %vm1586, %v1364, 0.0
      %v1619 = vsel %vm1587, %v1365, 0.0
      %v1620 = vsel %vm1588, %v1366, 0.0
      %v1621 = vsel %vm1589, %v1367, 0.0
      %v1622 = vsel %vm1590, %v1368, 0.0
      %v1623 = vsel %vm1591, %v1369, 0.0
      %v1624 = vsel %vm1592, %v1370, 0.0
      %v1625 = vsel %vm1593, %v1371, 0.0
      %v1626 = vsel %vm1594, %v1372, 0.0
      %v1627 = vsel %vm1595, %v1373, 0.0
      %v1628 = vsel %vm1596, %v1374, 0.0
      %v1629 = vsel %vm1597, %v1375, 0.0
      %v1630 = vsel %vm1598, %v1376, 0.0
      %v1631 = vsel %vm1599, %v1377, 0.0
      %v1632 = vsel %vm1600, %v1378, 0.0
      %v1633 = vsel %vm1601, %v1379, 0.0
      %v1634 = vsel %vm1602, %v1380, 0.0
      %v1635 = vsel %vm1603, %v1381, 0.0
      %v1636 = vsel %vm1604, %v1382, 0.0
      %v1637 = vsel %vm1605, %v1351, 0.0
      %v1638 = vsel %vm1606, %v1352, 0.0
      %v1639 = vpack.c.bf16 %v1480, %v1479
      %v1640 = vpack.c.bf16 %v1482, %v1481
      %v1641 = vpack.c.bf16 %v1484, %v1483
      %v1642 = vpack.c.bf16 %v1486, %v1485
      %v1643 = vpack.c.bf16 %v1488, %v1487
      %v1644 = vpack.c.bf16 %v1490, %v1489
      %v1645 = vpack.c.bf16 %v1492, %v1491
      %v1646 = vpack.c.bf16 %v1494, %v1493
      %v1647 = vpack.c.bf16 %v1496, %v1495
      %v1648 = vpack.c.bf16 %v1498, %v1497
      %v1649 = vpack.c.bf16 %v1500, %v1499
      %v1650 = vpack.c.bf16 %v1502, %v1501
      %v1651 = vpack.c.bf16 %v1504, %v1503
      %v1652 = vpack.c.bf16 %v1506, %v1505
      %v1653 = vpack.c.bf16 %v1508, %v1507
      %v1654 = vpack.c.bf16 %v1510, %v1509
      %v1655 = vld [vmem:[%s1] sm:$0xf]
      %v1656 = vld [vmem:[%s1 + $0x4] sm:$0x3]
      %v1657 = vpack.c.bf16 %v1352, %v1351
      %v1658 = vpack.c.bf16 %v1354, %v1353
      %v1659 = vpack.c.bf16 %v1356, %v1355
      %v1660 = vpack.c.bf16 %v1358, %v1357
      %v1661 = vpack.c.bf16 %v1360, %v1359
      %v1662 = vpack.c.bf16 %v1362, %v1361
      %v1663 = vpack.c.bf16 %v1364, %v1363
      %v1664 = vpack.c.bf16 %v1366, %v1365
      %v1665 = vpack.c.bf16 %v1368, %v1367
      %v1666 = vpack.c.bf16 %v1370, %v1369
      %v1667 = vpack.c.bf16 %v1372, %v1371
      %v1668 = vpack.c.bf16 %v1374, %v1373
      %v1669 = vpack.c.bf16 %v1376, %v1375
      %v1670 = vpack.c.bf16 %v1378, %v1377
      %v1671 = vpack.c.bf16 %v1380, %v1379
      %v1672 = vpack.c.bf16 %v1382, %v1381
      %s1673 = scalar_lea.vmem %s1, 8
      %v1674 = vld [vmem:[%s1673] sm:$0xf]
      %v1675 = vld [vmem:[%s1673 + $0x4] sm:$0x3]
      %v1678 = vunpack.c.l.b16 %v1674
      %v1679 = vunpack.c.l.b16 %v1675
      %v1680 = vpack.c.b16 %v1679, %v1678
      %vm1681 = vcmask 97280
      %v1683 = vsel %vm1681, %v1657, 0
      %v1686 = vsel %vm1681, %v1658, 0
      %v1689 = vsel %vm1681, %v1659, 0
      %v1692 = vsel %vm1681, %v1660, 0
      %v1695 = vsel %vm1681, %v1661, 0
      %v1698 = vsel %vm1681, %v1662, 0
      %v1701 = vsel %vm1681, %v1663, 0
      %v1704 = vsel %vm1681, %v1664, 0
      %v1707 = vsel %vm1681, %v1665, 0
      %v1710 = vsel %vm1681, %v1666, 0
      %v1713 = vsel %vm1681, %v1667, 0
      %v1716 = vsel %vm1681, %v1668, 0
      %v1719 = vsel %vm1681, %v1669, 0
      %v1722 = vsel %vm1681, %v1670, 0
      %v1725 = vsel %vm1681, %v1671, 0
      %v1728 = vsel %vm1681, %v1672, 0
      %vm1730 = vcmask 1045504
      %v1732 = vsel %vm1730, %v1680, 0
      %1734 = vmatprep.subr.bf16.mxu0 0
      %1735 = vmatpush1.bf16.msra.mxu0 %v1732
      %1736 = vmatprep.subr.bf16.mxu0 0
      %1737 = vmatpush1.bf16.msra.mxu0 0
      %1738 = vmatprep.subr.bf16.mxu0 0
      %1739 = vmatpush1.bf16.msra.mxu0 0
      %1740 = vmatprep.subr.bf16.mxu0 0
      %1741 = vmatpush1.bf16.msra.mxu0 0
      %1742 = vmatprep.subr.bf16.mxu0 0
      %1743 = vmatpush1.bf16.msra.mxu0 0
      %1744 = vmatprep.subr.bf16.mxu0 0
      %1745 = vmatpush1.bf16.msra.mxu0 0
      %1746 = vmatprep.subr.bf16.mxu0 0
      %1747 = vmatpush1.bf16.msra.mxu0 0
      %1748 = vmatprep.subr.bf16.mxu0 0
      %1749 = vmatpush1.bf16.msra.mxu0 0
      %1750 = vmatprep.subr.bf16.mxu0 0
      %1751 = vmatpush1.bf16.msra.mxu0 0
      %1752 = vmatprep.subr.bf16.mxu0 0
      %1753 = vmatpush1.bf16.msra.mxu0 0
      %1754 = vmatprep.subr.bf16.mxu0 0
      %1755 = vmatpush1.bf16.msra.mxu0 0
      %1756 = vmatprep.subr.bf16.mxu0 0
      %1757 = vmatpush1.bf16.msra.mxu0 0
      %1758 = vmatprep.subr.bf16.mxu0 0
      %1759 = vmatpush1.bf16.msra.mxu0 0
      %1760 = vmatprep.subr.bf16.mxu0 0
      %1761 = vmatpush1.bf16.msra.mxu0 0
      %1762 = vmatprep.subr.bf16.mxu0 0
      %1763 = vmatpush1.bf16.msra.mxu0 0
      %1764 = vmatprep.subr.bf16.mxu0 0
      %1765 = vmatpush1.bf16.msra.mxu0 0
      %1766 = vmatprep.mubr.bf16.mxu0 0
      %1767 = vmatmul.mubr.bf16.gmra.mrb[0].mxu0 %v1683
      %v1768 = vpop.f32.mrb[0].mxu0
      %v1769 = vadd.f32 0.0, %v1768
      %v1770 = vpop.f32.mrb[0].mxu0
      %v1771 = vpop.f32.mrb[0].mxu0
      %v1772 = vadd.f32 0.0, %v1771
      %v1773 = vpop.f32.mrb[0].mxu0
      %1774 = vmatprep.mubr.bf16.mxu0 0
      %1775 = vmatmul.mubr.bf16.gmra.mrb[0].mxu0 %v1686
      %v1776 = vpop.f32.mrb[0].mxu0
      %v1777 = vadd.f32 0.0, %v1776
      %v1778 = vpop.f32.mrb[0].mxu0
      %v1779 = vpop.f32.mrb[0].mxu0
      %v1780 = vadd.f32 0.0, %v1779
      %v1781 = vpop.f32.mrb[0].mxu0
      %1782 = vmatprep.mubr.bf16.mxu0 0
      %1783 = vmatmul.mubr.bf16.gmra.mrb[0].mxu0 %v1689
      %v1784 = vpop.f32.mrb[0].mxu0
      %v1785 = vadd.f32 0.0, %v1784
      %v1786 = vpop.f32.mrb[0].mxu0
      %v1787 = vpop.f32.mrb[0].mxu0
      %v1788 = vadd.f32 0.0, %v1787
      %v1789 = vpop.f32.mrb[0].mxu0
      %1790 = vmatprep.mubr.bf16.mxu0 0
      %1791 = vmatmul.mubr.bf16.gmra.mrb[0].mxu0 %v1692
      %v1792 = vpop.f32.mrb[0].mxu0
      %v1793 = vadd.f32 0.0, %v1792
      %v1794 = vpop.f32.mrb[0].mxu0
      %v1795 = vpop.f32.mrb[0].mxu0
      %v1796 = vadd.f32 0.0, %v1795
      %v1797 = vpop.f32.mrb[0].mxu0
      %1798 = vmatprep.mubr.bf16.mxu0 0
      %1799 = vmatmul.mubr.bf16.gmra.mrb[0].mxu0 %v1695
      %v1800 = vpop.f32.mrb[0].mxu0
      %v1801 = vadd.f32 0.0, %v1800
      %v1802 = vpop.f32.mrb[0].mxu0
      %v1803 = vpop.f32.mrb[0].mxu0
      %v1804 = vadd.f32 0.0, %v1803
      %v1805 = vpop.f32.mrb[0].mxu0
      %1806 = vmatprep.mubr.bf16.mxu0 0
      %1807 = vmatmul.mubr.bf16.gmra.mrb[0].mxu0 %v1698
      %v1808 = vpop.f32.mrb[0].mxu0
      %v1809 = vadd.f32 0.0, %v1808
      %v1810 = vpop.f32.mrb[0].mxu0
      %v1811 = vpop.f32.mrb[0].mxu0
      %v1812 = vadd.f32 0.0, %v1811
      %v1813 = vpop.f32.mrb[0].mxu0
      %1814 = vmatprep.mubr.bf16.mxu0 0
      %1815 = vmatmul.mubr.bf16.gmra.mrb[0].mxu0 %v1701
      %v1816 = vpop.f32.mrb[0].mxu0
      %v1817 = vadd.f32 0.0, %v1816
      %v1818 = vpop.f32.mrb[0].mxu0
      %v1819 = vpop.f32.mrb[0].mxu0
      %v1820 = vadd.f32 0.0, %v1819
      %v1821 = vpop.f32.mrb[0].mxu0
      %1822 = vmatprep.mubr.bf16.mxu0 0
      %1823 = vmatmul.mubr.bf16.gmra.mrb[0].mxu0 %v1704
      %v1824 = vpop.f32.mrb[0].mxu0
      %v1825 = vadd.f32 0.0, %v1824
      %v1826 = vpop.f32.mrb[0].mxu0
      %v1827 = vpop.f32.mrb[0].mxu0
      %v1828 = vadd.f32 0.0, %v1827
      %v1829 = vpop.f32.mrb[0].mxu0
      %1830 = vmatprep.mubr.bf16.mxu0 0
      %1831 = vmatmul.mubr.bf16.gmra.mrb[0].mxu0 %v1707
      %v1832 = vpop.f32.mrb[0].mxu0
      %v1833 = vadd.f32 0.0, %v1832
      %v1834 = vpop.f32.mrb[0].mxu0
      %v1835 = vpop.f32.mrb[0].mxu0
      %v1836 = vadd.f32 0.0, %v1835
      %v1837 = vpop.f32.mrb[0].mxu0
      %1838 = vmatprep.mubr.bf16.mxu0 0
      %1839 = vmatmul.mubr.bf16.gmra.mrb[0].mxu0 %v1710
      %v1840 = vpop.f32.mrb[0].mxu0
      %v1841 = vadd.f32 0.0, %v1840
      %v1842 = vpop.f32.mrb[0].mxu0
      %v1843 = vpop.f32.mrb[0].mxu0
      %v1844 = vadd.f32 0.0, %v1843
      %v1845 = vpop.f32.mrb[0].mxu0
      %1846 = vmatprep.mubr.bf16.mxu0 0
      %1847 = vmatmul.mubr.bf16.gmra.mrb[0].mxu0 %v1713
      %v1848 = vpop.f32.mrb[0].mxu0
      %v1849 = vadd.f32 0.0, %v1848
      %v1850 = vpop.f32.mrb[0].mxu0
      %v1851 = vpop.f32.mrb[0].mxu0
      %v1852 = vadd.f32 0.0, %v1851
      %v1853 = vpop.f32.mrb[0].mxu0
      %1854 = vmatprep.mubr.bf16.mxu0 0
      %1855 = vmatmul.mubr.bf16.gmra.mrb[0].mxu0 %v1716
      %v1856 = vpop.f32.mrb[0].mxu0
      %v1857 = vadd.f32 0.0, %v1856
      %v1858 = vpop.f32.mrb[0].mxu0
      %v1859 = vpop.f32.mrb[0].mxu0
      %v1860 = vadd.f32 0.0, %v1859
      %v1861 = vpop.f32.mrb[0].mxu0
      %1862 = vmatprep.mubr.bf16.mxu0 0
      %1863 = vmatmul.mubr.bf16.gmra.mrb[0].mxu0 %v1719
      %v1864 = vpop.f32.mrb[0].mxu0
      %v1865 = vadd.f32 0.0, %v1864
      %v1866 = vpop.f32.mrb[0].mxu0
      %v1867 = vpop.f32.mrb[0].mxu0
      %v1868 = vadd.f32 0.0, %v1867
      %v1869 = vpop.f32.mrb[0].mxu0
      %1870 = vmatprep.mubr.bf16.mxu0 0
      %1871 = vmatmul.mubr.bf16.gmra.mrb[0].mxu0 %v1722
      %v1872 = vpop.f32.mrb[0].mxu0
      %v1873 = vadd.f32 0.0, %v1872
      %v1874 = vpop.f32.mrb[0].mxu0
      %v1875 = vpop.f32.mrb[0].mxu0
      %v1876 = vadd.f32 0.0, %v1875
      %v1877 = vpop.f32.mrb[0].mxu0
      %1878 = vmatprep.mubr.bf16.mxu0 0
      %1879 = vmatmul.mubr.bf16.gmra.mrb[0].mxu0 %v1725
      %v1880 = vpop.f32.mrb[0].mxu0
      %v1881 = vadd.f32 0.0, %v1880
      %v1882 = vpop.f32.mrb[0].mxu0
      %v1883 = vpop.f32.mrb[0].mxu0
      %v1884 = vadd.f32 0.0, %v1883
      %v1885 = vpop.f32.mrb[0].mxu0
      %1886 = vmatprep.mubr.bf16.mxu0 0
      %1887 = vmatmul.mubr.bf16.gmra.mrb[0].mxu0 %v1728
      %v1888 = vpop.f32.mrb[0].mxu0
      %v1889 = vadd.f32 0.0, %v1888
      %v1890 = vpop.f32.mrb[0].mxu0
      %v1891 = vpop.f32.mrb[0].mxu0
      %v1892 = vadd.f32 0.0, %v1891
      %v1893 = vpop.f32.mrb[0].mxu0
      %1894 = vdwg.mxu0
      %v1897 = vunpack.c.l.b16 %v1655
      %v1898 = vunpack.c.l.b16 %v1656
      %v1899 = vpack.c.b16 %v1898, %v1897
      %v1901 = vsel %vm1681, %v1639, 0
      %v1904 = vsel %vm1681, %v1640, 0
      %v1907 = vsel %vm1681, %v1641, 0
      %v1910 = vsel %vm1681, %v1642, 0
      %v1913 = vsel %vm1681, %v1643, 0
      %v1916 = vsel %vm1681, %v1644, 0
      %v1919 = vsel %vm1681, %v1645, 0
      %v1922 = vsel %vm1681, %v1646, 0
      %v1925 = vsel %vm1681, %v1647, 0
      %v1928 = vsel %vm1681, %v1648, 0
      %v1931 = vsel %vm1681, %v1649, 0
      %v1934 = vsel %vm1681, %v1650, 0
      %v1937 = vsel %vm1681, %v1651, 0
      %v1940 = vsel %vm1681, %v1652, 0
      %v1943 = vsel %vm1681, %v1653, 0
      %v1946 = vsel %vm1681, %v1654, 0
      %v1949 = vsel %vm1730, %v1899, 0
      %1951 = vmatprep.subr.bf16.mxu0 0
      %1952 = vmatpush1.bf16.msra.mxu0 %v1949
      %1953 = vmatprep.subr.bf16.mxu0 0
      %1954 = vmatpush1.bf16.msra.mxu0 0
      %1955 = vmatprep.subr.bf16.mxu0 0
      %1956 = vmatpush1.bf16.msra.mxu0 0
      %1957 = vmatprep.subr.bf16.mxu0 0
      %1958 = vmatpush1.bf16.msra.mxu0 0
      %1959 = vmatprep.subr.bf16.mxu0 0
      %1960 = vmatpush1.bf16.msra.mxu0 0
      %1961 = vmatprep.subr.bf16.mxu0 0
      %1962 = vmatpush1.bf16.msra.mxu0 0
      %1963 = vmatprep.subr.bf16.mxu0 0
      %1964 = vmatpush1.bf16.msra.mxu0 0
      %1965 = vmatprep.subr.bf16.mxu0 0
      %1966 = vmatpush1.bf16.msra.mxu0 0
      %1967 = vmatprep.subr.bf16.mxu0 0
      %1968 = vmatpush1.bf16.msra.mxu0 0
      %1969 = vmatprep.subr.bf16.mxu0 0
      %1970 = vmatpush1.bf16.msra.mxu0 0
      %1971 = vmatprep.subr.bf16.mxu0 0
      %1972 = vmatpush1.bf16.msra.mxu0 0
      %1973 = vmatprep.subr.bf16.mxu0 0
      %1974 = vmatpush1.bf16.msra.mxu0 0
      %1975 = vmatprep.subr.bf16.mxu0 0
      %1976 = vmatpush1.bf16.msra.mxu0 0
      %1977 = vmatprep.subr.bf16.mxu0 0
      %1978 = vmatpush1.bf16.msra.mxu0 0
      %1979 = vmatprep.subr.bf16.mxu0 0
      %1980 = vmatpush1.bf16.msra.mxu0 0
      %1981 = vmatprep.subr.bf16.mxu0 0
      %1982 = vmatpush1.bf16.msra.mxu0 0
      %1983 = vmatprep.mubr.bf16.mxu0 0
      %1984 = vmatmul.mubr.bf16.gmra.mrb[0].mxu0 %v1901
      %v1985 = vpop.f32.mrb[0].mxu0
      %v1986 = vadd.f32 %v1769, %v1985
      %v1987 = vpop.f32.mrb[0].mxu0
      %v1988 = vpop.f32.mrb[0].mxu0
      %v1989 = vadd.f32 %v1772, %v1988
      %v1990 = vpop.f32.mrb[0].mxu0
      %1991 = vmatprep.mubr.bf16.mxu0 0
      %1992 = vmatmul.mubr.bf16.gmra.mrb[0].mxu0 %v1904
      %v1993 = vpop.f32.mrb[0].mxu0
      %v1994 = vadd.f32 %v1777, %v1993
      %v1995 = vpop.f32.mrb[0].mxu0
      %v1996 = vpop.f32.mrb[0].mxu0
      %v1997 = vadd.f32 %v1780, %v1996
      %v1998 = vpop.f32.mrb[0].mxu0
      %1999 = vmatprep.mubr.bf16.mxu0 0
      %2000 = vmatmul.mubr.bf16.gmra.mrb[0].mxu0 %v1907
      %v2001 = vpop.f32.mrb[0].mxu0
      %v2002 = vadd.f32 %v1785, %v2001
      %v2003 = vpop.f32.mrb[0].mxu0
      %v2004 = vpop.f32.mrb[0].mxu0
      %v2005 = vadd.f32 %v1788, %v2004
      %v2006 = vpop.f32.mrb[0].mxu0
      %2007 = vmatprep.mubr.bf16.mxu0 0
      %2008 = vmatmul.mubr.bf16.gmra.mrb[0].mxu0 %v1910
      %v2009 = vpop.f32.mrb[0].mxu0
      %v2010 = vadd.f32 %v1793, %v2009
      %v2011 = vpop.f32.mrb[0].mxu0
      %v2012 = vpop.f32.mrb[0].mxu0
      %v2013 = vadd.f32 %v1796, %v2012
      %v2014 = vpop.f32.mrb[0].mxu0
      %2015 = vmatprep.mubr.bf16.mxu0 0
      %2016 = vmatmul.mubr.bf16.gmra.mrb[0].mxu0 %v1913
      %v2017 = vpop.f32.mrb[0].mxu0
      %v2018 = vadd.f32 %v1801, %v2017
      %v2019 = vpop.f32.mrb[0].mxu0
      %v2020 = vpop.f32.mrb[0].mxu0
      %v2021 = vadd.f32 %v1804, %v2020
      %v2022 = vpop.f32.mrb[0].mxu0
      %2023 = vmatprep.mubr.bf16.mxu0 0
      %2024 = vmatmul.mubr.bf16.gmra.mrb[0].mxu0 %v1916
      %v2025 = vpop.f32.mrb[0].mxu0
      %v2026 = vadd.f32 %v1809, %v2025
      %v2027 = vpop.f32.mrb[0].mxu0
      %v2028 = vpop.f32.mrb[0].mxu0
      %v2029 = vadd.f32 %v1812, %v2028
      %v2030 = vpop.f32.mrb[0].mxu0
      %2031 = vmatprep.mubr.bf16.mxu0 0
      %2032 = vmatmul.mubr.bf16.gmra.mrb[0].mxu0 %v1919
      %v2033 = vpop.f32.mrb[0].mxu0
      %v2034 = vadd.f32 %v1817, %v2033
      %v2035 = vpop.f32.mrb[0].mxu0
      %v2036 = vpop.f32.mrb[0].mxu0
      %v2037 = vadd.f32 %v1820, %v2036
      %v2038 = vpop.f32.mrb[0].mxu0
      %2039 = vmatprep.mubr.bf16.mxu0 0
      %2040 = vmatmul.mubr.bf16.gmra.mrb[0].mxu0 %v1922
      %v2041 = vpop.f32.mrb[0].mxu0
      %v2042 = vadd.f32 %v1825, %v2041
      %v2043 = vpop.f32.mrb[0].mxu0
      %v2044 = vpop.f32.mrb[0].mxu0
      %v2045 = vadd.f32 %v1828, %v2044
      %v2046 = vpop.f32.mrb[0].mxu0
      %2047 = vmatprep.mubr.bf16.mxu0 0
      %2048 = vmatmul.mubr.bf16.gmra.mrb[0].mxu0 %v1925
      %v2049 = vpop.f32.mrb[0].mxu0
      %v2050 = vadd.f32 %v1833, %v2049
      %v2051 = vpop.f32.mrb[0].mxu0
      %v2052 = vpop.f32.mrb[0].mxu0
      %v2053 = vadd.f32 %v1836, %v2052
      %v2054 = vpop.f32.mrb[0].mxu0
      %2055 = vmatprep.mubr.bf16.mxu0 0
      %2056 = vmatmul.mubr.bf16.gmra.mrb[0].mxu0 %v1928
      %v2057 = vpop.f32.mrb[0].mxu0
      %v2058 = vadd.f32 %v1841, %v2057
      %v2059 = vpop.f32.mrb[0].mxu0
      %v2060 = vpop.f32.mrb[0].mxu0
      %v2061 = vadd.f32 %v1844, %v2060
      %v2062 = vpop.f32.mrb[0].mxu0
      %2063 = vmatprep.mubr.bf16.mxu0 0
      %2064 = vmatmul.mubr.bf16.gmra.mrb[0].mxu0 %v1931
      %v2065 = vpop.f32.mrb[0].mxu0
      %v2066 = vadd.f32 %v1849, %v2065
      %v2067 = vpop.f32.mrb[0].mxu0
      %v2068 = vpop.f32.mrb[0].mxu0
      %v2069 = vadd.f32 %v1852, %v2068
      %v2070 = vpop.f32.mrb[0].mxu0
      %2071 = vmatprep.mubr.bf16.mxu0 0
      %2072 = vmatmul.mubr.bf16.gmra.mrb[0].mxu0 %v1934
      %v2073 = vpop.f32.mrb[0].mxu0
      %v2074 = vadd.f32 %v1857, %v2073
      %v2075 = vpop.f32.mrb[0].mxu0
      %v2076 = vpop.f32.mrb[0].mxu0
      %v2077 = vadd.f32 %v1860, %v2076
      %v2078 = vpop.f32.mrb[0].mxu0
      %2079 = vmatprep.mubr.bf16.mxu0 0
      %2080 = vmatmul.mubr.bf16.gmra.mrb[0].mxu0 %v1937
      %v2081 = vpop.f32.mrb[0].mxu0
      %v2082 = vadd.f32 %v1865, %v2081
      %v2083 = vpop.f32.mrb[0].mxu0
      %v2084 = vpop.f32.mrb[0].mxu0
      %v2085 = vadd.f32 %v1868, %v2084
      %v2086 = vpop.f32.mrb[0].mxu0
      %2087 = vmatprep.mubr.bf16.mxu0 0
      %2088 = vmatmul.mubr.bf16.gmra.mrb[0].mxu0 %v1940
      %v2089 = vpop.f32.mrb[0].mxu0
      %v2090 = vadd.f32 %v1873, %v2089
      %v2091 = vpop.f32.mrb[0].mxu0
      %v2092 = vpop.f32.mrb[0].mxu0
      %v2093 = vadd.f32 %v1876, %v2092
      %v2094 = vpop.f32.mrb[0].mxu0
      %2095 = vmatprep.mubr.bf16.mxu0 0
      %2096 = vmatmul.mubr.bf16.gmra.mrb[0].mxu0 %v1943
      %v2097 = vpop.f32.mrb[0].mxu0
      %v2098 = vadd.f32 %v1881, %v2097
      %v2099 = vpop.f32.mrb[0].mxu0
      %v2100 = vpop.f32.mrb[0].mxu0
      %v2101 = vadd.f32 %v1884, %v2100
      %v2102 = vpop.f32.mrb[0].mxu0
      %2103 = vmatprep.mubr.bf16.mxu0 0
      %2104 = vmatmul.mubr.bf16.gmra.mrb[0].mxu0 %v1946
      %v2105 = vpop.f32.mrb[0].mxu0
      %v2106 = vadd.f32 %v1889, %v2105
      %v2107 = vpop.f32.mrb[0].mxu0
      %v2108 = vpop.f32.mrb[0].mxu0
      %v2109 = vadd.f32 %v1892, %v2108
      %v2110 = vpop.f32.mrb[0].mxu0
      %2111 = vdwg.mxu0
      %v2112 = vpack.c.bf16 %v1608, %v1607
      %v2113 = vpack.c.bf16 %v1610, %v1609
      %v2114 = vpack.c.bf16 %v1612, %v1611
      %v2115 = vpack.c.bf16 %v1614, %v1613
      %v2116 = vpack.c.bf16 %v1616, %v1615
      %v2117 = vpack.c.bf16 %v1618, %v1617
      %v2118 = vpack.c.bf16 %v1620, %v1619
      %v2119 = vpack.c.bf16 %v1622, %v1621
      %v2120 = vpack.c.bf16 %v1624, %v1623
      %v2121 = vpack.c.bf16 %v1626, %v1625
      %v2122 = vpack.c.bf16 %v1628, %v1627
      %v2123 = vpack.c.bf16 %v1630, %v1629
      %v2124 = vpack.c.bf16 %v1632, %v1631
      %v2125 = vpack.c.bf16 %v1634, %v1633
      %v2126 = vpack.c.bf16 %v1636, %v1635
      %v2127 = vpack.c.bf16 %v1638, %v1637
      %s2128 = scalar_lea.vmem %s1, 16
      %v2129 = vld [vmem:[%s2128] sm:$0xf]
      %v2130 = vld [vmem:[%s2128 + $0x4] sm:$0x3]
      %v2133 = vunpack.c.l.b16 %v2129
      %v2134 = vunpack.c.l.b16 %v2130
      %v2135 = vpack.c.b16 %v2134, %v2133
      %v2137 = vsel %vm1681, %v2112, 0
      %v2140 = vsel %vm1681, %v2113, 0
      %v2143 = vsel %vm1681, %v2114, 0
      %v2146 = vsel %vm1681, %v2115, 0
      %v2149 = vsel %vm1681, %v2116, 0
      %v2152 = vsel %vm1681, %v2117, 0
      %v2155 = vsel %vm1681, %v2118, 0
      %v2158 = vsel %vm1681, %v2119, 0
      %v2161 = vsel %vm1681, %v2120, 0
      %v2164 = vsel %vm1681, %v2121, 0
      %v2167 = vsel %vm1681, %v2122, 0
      %v2170 = vsel %vm1681, %v2123, 0
      %v2173 = vsel %vm1681, %v2124, 0
      %v2176 = vsel %vm1681, %v2125, 0
      %v2179 = vsel %vm1681, %v2126, 0
      %v2182 = vsel %vm1681, %v2127, 0
      %v2185 = vsel %vm1730, %v2135, 0
      %2187 = vmatprep.subr.bf16.mxu0 0
      %2188 = vmatpush1.bf16.msra.mxu0 %v2185
      %2189 = vmatprep.subr.bf16.mxu0 0
      %2190 = vmatpush1.bf16.msra.mxu0 0
      %2191 = vmatprep.subr.bf16.mxu0 0
      %2192 = vmatpush1.bf16.msra.mxu0 0
      %2193 = vmatprep.subr.bf16.mxu0 0
      %2194 = vmatpush1.bf16.msra.mxu0 0
      %2195 = vmatprep.subr.bf16.mxu0 0
      %2196 = vmatpush1.bf16.msra.mxu0 0
      %2197 = vmatprep.subr.bf16.mxu0 0
      %2198 = vmatpush1.bf16.msra.mxu0 0
      %2199 = vmatprep.subr.bf16.mxu0 0
      %2200 = vmatpush1.bf16.msra.mxu0 0
      %2201 = vmatprep.subr.bf16.mxu0 0
      %2202 = vmatpush1.bf16.msra.mxu0 0
      %2203 = vmatprep.subr.bf16.mxu0 0
      %2204 = vmatpush1.bf16.msra.mxu0 0
      %2205 = vmatprep.subr.bf16.mxu0 0
      %2206 = vmatpush1.bf16.msra.mxu0 0
      %2207 = vmatprep.subr.bf16.mxu0 0
      %2208 = vmatpush1.bf16.msra.mxu0 0
      %2209 = vmatprep.subr.bf16.mxu0 0
      %2210 = vmatpush1.bf16.msra.mxu0 0
      %2211 = vmatprep.subr.bf16.mxu0 0
      %2212 = vmatpush1.bf16.msra.mxu0 0
      %2213 = vmatprep.subr.bf16.mxu0 0
      %2214 = vmatpush1.bf16.msra.mxu0 0
      %2215 = vmatprep.subr.bf16.mxu0 0
      %2216 = vmatpush1.bf16.msra.mxu0 0
      %2217 = vmatprep.subr.bf16.mxu0 0
      %2218 = vmatpush1.bf16.msra.mxu0 0
      %2219 = vmatprep.mubr.bf16.mxu0 0
      %2220 = vmatmul.mubr.bf16.gmra.mrb[0].mxu0 %v2137
      %v2221 = vpop.f32.mrb[0].mxu0
      %v2222 = vadd.f32 0.0, %v2221
      %v2223 = vpop.f32.mrb[0].mxu0
      %v2224 = vpop.f32.mrb[0].mxu0
      %v2225 = vadd.f32 0.0, %v2224
      %v2226 = vpop.f32.mrb[0].mxu0
      %2227 = vmatprep.mubr.bf16.mxu0 0
      %2228 = vmatmul.mubr.bf16.gmra.mrb[0].mxu0 %v2140
      %v2229 = vpop.f32.mrb[0].mxu0
      %v2230 = vadd.f32 0.0, %v2229
      %v2231 = vpop.f32.mrb[0].mxu0
      %v2232 = vpop.f32.mrb[0].mxu0
      %v2233 = vadd.f32 0.0, %v2232
      %v2234 = vpop.f32.mrb[0].mxu0
      %2235 = vmatprep.mubr.bf16.mxu0 0
      %2236 = vmatmul.mubr.bf16.gmra.mrb[0].mxu0 %v2143
      %v2237 = vpop.f32.mrb[0].mxu0
      %v2238 = vadd.f32 0.0, %v2237
      %v2239 = vpop.f32.mrb[0].mxu0
      %v2240 = vpop.f32.mrb[0].mxu0
      %v2241 = vadd.f32 0.0, %v2240
      %v2242 = vpop.f32.mrb[0].mxu0
      %2243 = vmatprep.mubr.bf16.mxu0 0
      %2244 = vmatmul.mubr.bf16.gmra.mrb[0].mxu0 %v2146
      %v2245 = vpop.f32.mrb[0].mxu0
      %v2246 = vadd.f32 0.0, %v2245
      %v2247 = vpop.f32.mrb[0].mxu0
      %v2248 = vpop.f32.mrb[0].mxu0
      %v2249 = vadd.f32 0.0, %v2248
      %v2250 = vpop.f32.mrb[0].mxu0
      %2251 = vmatprep.mubr.bf16.mxu0 0
      %2252 = vmatmul.mubr.bf16.gmra.mrb[0].mxu0 %v2149
      %v2253 = vpop.f32.mrb[0].mxu0
      %v2254 = vadd.f32 0.0, %v2253
      %v2255 = vpop.f32.mrb[0].mxu0
      %v2256 = vpop.f32.mrb[0].mxu0
      %v2257 = vadd.f32 0.0, %v2256
      %v2258 = vpop.f32.mrb[0].mxu0
      %2259 = vmatprep.mubr.bf16.mxu0 0
      %2260 = vmatmul.mubr.bf16.gmra.mrb[0].mxu0 %v2152
      %v2261 = vpop.f32.mrb[0].mxu0
      %v2262 = vadd.f32 0.0, %v2261
      %v2263 = vpop.f32.mrb[0].mxu0
      %v2264 = vpop.f32.mrb[0].mxu0
      %v2265 = vadd.f32 0.0, %v2264
      %v2266 = vpop.f32.mrb[0].mxu0
      %2267 = vmatprep.mubr.bf16.mxu0 0
      %2268 = vmatmul.mubr.bf16.gmra.mrb[0].mxu0 %v2155
      %v2269 = vpop.f32.mrb[0].mxu0
      %v2270 = vadd.f32 0.0, %v2269
      %v2271 = vpop.f32.mrb[0].mxu0
      %v2272 = vpop.f32.mrb[0].mxu0
      %v2273 = vadd.f32 0.0, %v2272
      %v2274 = vpop.f32.mrb[0].mxu0
      %2275 = vmatprep.mubr.bf16.mxu0 0
      %2276 = vmatmul.mubr.bf16.gmra.mrb[0].mxu0 %v2158
      %v2277 = vpop.f32.mrb[0].mxu0
      %v2278 = vadd.f32 0.0, %v2277
      %v2279 = vpop.f32.mrb[0].mxu0
      %v2280 = vpop.f32.mrb[0].mxu0
      %v2281 = vadd.f32 0.0, %v2280
      %v2282 = vpop.f32.mrb[0].mxu0
      %2283 = vmatprep.mubr.bf16.mxu0 0
      %2284 = vmatmul.mubr.bf16.gmra.mrb[0].mxu0 %v2161
      %v2285 = vpop.f32.mrb[0].mxu0
      %v2286 = vadd.f32 0.0, %v2285
      %v2287 = vpop.f32.mrb[0].mxu0
      %v2288 = vpop.f32.mrb[0].mxu0
      %v2289 = vadd.f32 0.0, %v2288
      %v2290 = vpop.f32.mrb[0].mxu0
      %2291 = vmatprep.mubr.bf16.mxu0 0
      %2292 = vmatmul.mubr.bf16.gmra.mrb[0].mxu0 %v2164
      %v2293 = vpop.f32.mrb[0].mxu0
      %v2294 = vadd.f32 0.0, %v2293
      %v2295 = vpop.f32.mrb[0].mxu0
      %v2296 = vpop.f32.mrb[0].mxu0
      %v2297 = vadd.f32 0.0, %v2296
      %v2298 = vpop.f32.mrb[0].mxu0
      %2299 = vmatprep.mubr.bf16.mxu0 0
      %2300 = vmatmul.mubr.bf16.gmra.mrb[0].mxu0 %v2167
      %v2301 = vpop.f32.mrb[0].mxu0
      %v2302 = vadd.f32 0.0, %v2301
      %v2303 = vpop.f32.mrb[0].mxu0
      %v2304 = vpop.f32.mrb[0].mxu0
      %v2305 = vadd.f32 0.0, %v2304
      %v2306 = vpop.f32.mrb[0].mxu0
      %2307 = vmatprep.mubr.bf16.mxu0 0
      %2308 = vmatmul.mubr.bf16.gmra.mrb[0].mxu0 %v2170
      %v2309 = vpop.f32.mrb[0].mxu0
      %v2310 = vadd.f32 0.0, %v2309
      %v2311 = vpop.f32.mrb[0].mxu0
      %v2312 = vpop.f32.mrb[0].mxu0
      %v2313 = vadd.f32 0.0, %v2312
      %v2314 = vpop.f32.mrb[0].mxu0
      %2315 = vmatprep.mubr.bf16.mxu0 0
      %2316 = vmatmul.mubr.bf16.gmra.mrb[0].mxu0 %v2173
      %v2317 = vpop.f32.mrb[0].mxu0
      %v2318 = vadd.f32 0.0, %v2317
      %v2319 = vpop.f32.mrb[0].mxu0
      %v2320 = vpop.f32.mrb[0].mxu0
      %v2321 = vadd.f32 0.0, %v2320
      %v2322 = vpop.f32.mrb[0].mxu0
      %2323 = vmatprep.mubr.bf16.mxu0 0
      %2324 = vmatmul.mubr.bf16.gmra.mrb[0].mxu0 %v2176
      %v2325 = vpop.f32.mrb[0].mxu0
      %v2326 = vadd.f32 0.0, %v2325
      %v2327 = vpop.f32.mrb[0].mxu0
      %v2328 = vpop.f32.mrb[0].mxu0
      %v2329 = vadd.f32 0.0, %v2328
      %v2330 = vpop.f32.mrb[0].mxu0
      %2331 = vmatprep.mubr.bf16.mxu0 0
      %2332 = vmatmul.mubr.bf16.gmra.mrb[0].mxu0 %v2179
      %v2333 = vpop.f32.mrb[0].mxu0
      %v2334 = vadd.f32 0.0, %v2333
      %v2335 = vpop.f32.mrb[0].mxu0
      %v2336 = vpop.f32.mrb[0].mxu0
      %v2337 = vadd.f32 0.0, %v2336
      %v2338 = vpop.f32.mrb[0].mxu0
      %2339 = vmatprep.mubr.bf16.mxu0 0
      %2340 = vmatmul.mubr.bf16.gmra.mrb[0].mxu0 %v2182
      %v2341 = vpop.f32.mrb[0].mxu0
      %v2342 = vadd.f32 0.0, %v2341
      %v2343 = vpop.f32.mrb[0].mxu0
      %v2344 = vpop.f32.mrb[0].mxu0
      %v2345 = vadd.f32 0.0, %v2344
      %v2346 = vpop.f32.mrb[0].mxu0
      %2347 = vdwg.mxu0
      %v2348 = vadd.f32 %v1986, %v2222
      %v2349 = vadd.f32 %v1989, %v2225
      %v2350 = vadd.f32 %v1994, %v2230
      %v2351 = vadd.f32 %v1997, %v2233
      %v2352 = vadd.f32 %v2002, %v2238
      %v2353 = vadd.f32 %v2005, %v2241
      %v2354 = vadd.f32 %v2010, %v2246
      %v2355 = vadd.f32 %v2013, %v2249
      %v2356 = vadd.f32 %v2018, %v2254
      %v2357 = vadd.f32 %v2021, %v2257
      %v2358 = vadd.f32 %v2026, %v2262
      %v2359 = vadd.f32 %v2029, %v2265
      %v2360 = vadd.f32 %v2034, %v2270
      %v2361 = vadd.f32 %v2037, %v2273
      %v2362 = vadd.f32 %v2042, %v2278
      %v2363 = vadd.f32 %v2045, %v2281
      %v2364 = vadd.f32 %v2050, %v2286
      %v2365 = vadd.f32 %v2053, %v2289
      %v2366 = vadd.f32 %v2058, %v2294
      %v2367 = vadd.f32 %v2061, %v2297
      %v2368 = vadd.f32 %v2066, %v2302
      %v2369 = vadd.f32 %v2069, %v2305
      %v2370 = vadd.f32 %v2074, %v2310
      %v2371 = vadd.f32 %v2077, %v2313
      %v2372 = vadd.f32 %v2082, %v2318
      %v2373 = vadd.f32 %v2085, %v2321
      %v2374 = vadd.f32 %v2090, %v2326
      %v2375 = vadd.f32 %v2093, %v2329
      %v2376 = vadd.f32 %v2098, %v2334
      %v2377 = vadd.f32 %v2101, %v2337
      %v2378 = vadd.f32 %v2106, %v2342
      %v2379 = vadd.f32 %v2109, %v2345
      %v2380 = vld [vmem:[%s2] sm:$0x1]
      %v2382 = vlaneseq
      %v2383 = vshrl.u32 %v2382, 7
      %v2384 = vsub.s32 0, %v2383
      %v2385 = vrot.slane %v2380, %v2384
      %v2387 = vadd.f32 %v2348, %v2385
      %v2388 = vadd.f32 %v2349, %v2385
      %v2389 = vadd.f32 %v2350, %v2385
      %v2390 = vadd.f32 %v2351, %v2385
      %v2391 = vadd.f32 %v2352, %v2385
      %v2392 = vadd.f32 %v2353, %v2385
      %v2393 = vadd.f32 %v2354, %v2385
      %v2394 = vadd.f32 %v2355, %v2385
      %v2395 = vadd.f32 %v2356, %v2385
      %v2396 = vadd.f32 %v2357, %v2385
      %v2397 = vadd.f32 %v2358, %v2385
      %v2398 = vadd.f32 %v2359, %v2385
      %v2399 = vadd.f32 %v2360, %v2385
      %v2400 = vadd.f32 %v2361, %v2385
      %v2401 = vadd.f32 %v2362, %v2385
      %v2402 = vadd.f32 %v2363, %v2385
      %v2403 = vadd.f32 %v2364, %v2385
      %v2404 = vadd.f32 %v2365, %v2385
      %v2405 = vadd.f32 %v2366, %v2385
      %v2406 = vadd.f32 %v2367, %v2385
      %v2407 = vadd.f32 %v2368, %v2385
      %v2408 = vadd.f32 %v2369, %v2385
      %v2409 = vadd.f32 %v2370, %v2385
      %v2410 = vadd.f32 %v2371, %v2385
      %v2411 = vadd.f32 %v2372, %v2385
      %v2412 = vadd.f32 %v2373, %v2385
      %v2413 = vadd.f32 %v2374, %v2385
      %v2414 = vadd.f32 %v2375, %v2385
      %v2415 = vadd.f32 %v2376, %v2385
      %v2416 = vadd.f32 %v2377, %v2385
      %v2417 = vadd.f32 %v2378, %v2385
      %v2418 = vadd.f32 %v2379, %v2385
      %v2419 = vmax.f32 %v2387, 0.0
      %v2420 = vmax.f32 %v2388, 0.0
      %v2421 = vmax.f32 %v2389, 0.0
      %v2422 = vmax.f32 %v2390, 0.0
      %v2423 = vmax.f32 %v2391, 0.0
      %v2424 = vmax.f32 %v2392, 0.0
      %v2425 = vmax.f32 %v2393, 0.0
      %v2426 = vmax.f32 %v2394, 0.0
      %v2427 = vmax.f32 %v2395, 0.0
      %v2428 = vmax.f32 %v2396, 0.0
      %v2429 = vmax.f32 %v2397, 0.0
      %v2430 = vmax.f32 %v2398, 0.0
      %v2431 = vmax.f32 %v2399, 0.0
      %v2432 = vmax.f32 %v2400, 0.0
      %v2433 = vmax.f32 %v2401, 0.0
      %v2434 = vmax.f32 %v2402, 0.0
      %v2435 = vmax.f32 %v2403, 0.0
      %v2436 = vmax.f32 %v2404, 0.0
      %v2437 = vmax.f32 %v2405, 0.0
      %v2438 = vmax.f32 %v2406, 0.0
      %v2439 = vmax.f32 %v2407, 0.0
      %v2440 = vmax.f32 %v2408, 0.0
      %v2441 = vmax.f32 %v2409, 0.0
      %v2442 = vmax.f32 %v2410, 0.0
      %v2443 = vmax.f32 %v2411, 0.0
      %v2444 = vmax.f32 %v2412, 0.0
      %v2445 = vmax.f32 %v2413, 0.0
      %v2446 = vmax.f32 %v2414, 0.0
      %v2447 = vmax.f32 %v2415, 0.0
      %v2448 = vmax.f32 %v2416, 0.0
      %v2449 = vmax.f32 %v2417, 0.0
      %v2450 = vmax.f32 %v2418, 0.0
      %v2451 = vsel %vm1350, %v2419, 0.0
      %v2452 = vsel %vm1350, %v2420, 0.0
      %v2453 = vadd.f32 %v2451, %v2452
      %v2454 = vsel %vm1350, %v2421, 0.0
      %v2455 = vadd.f32 %v2453, %v2454
      %v2456 = vsel %vm1350, %v2422, 0.0
      %v2457 = vadd.f32 %v2455, %v2456
      %v2458 = vsel %vm1350, %v2423, 0.0
      %v2459 = vadd.f32 %v2457, %v2458
      %v2460 = vsel %vm1350, %v2424, 0.0
      %v2461 = vadd.f32 %v2459, %v2460
      %v2462 = vsel %vm1350, %v2425, 0.0
      %v2463 = vadd.f32 %v2461, %v2462
      %v2464 = vsel %vm1350, %v2426, 0.0
      %v2465 = vadd.f32 %v2463, %v2464
      %v2466 = vsel %vm1350, %v2427, 0.0
      %v2467 = vadd.f32 %v2465, %v2466
      %v2468 = vsel %vm1350, %v2428, 0.0
      %v2469 = vadd.f32 %v2467, %v2468
      %v2470 = vsel %vm1350, %v2429, 0.0
      %v2471 = vadd.f32 %v2469, %v2470
      %v2472 = vsel %vm1350, %v2430, 0.0
      %v2473 = vadd.f32 %v2471, %v2472
      %v2474 = vsel %vm1350, %v2431, 0.0
      %v2475 = vadd.f32 %v2473, %v2474
      %v2476 = vsel %vm1350, %v2432, 0.0
      %v2477 = vadd.f32 %v2475, %v2476
      %v2478 = vsel %vm1350, %v2433, 0.0
      %v2479 = vadd.f32 %v2477, %v2478
      %v2480 = vsel %vm1350, %v2434, 0.0
      %v2481 = vadd.f32 %v2479, %v2480
      %v2482 = vsel %vm1350, %v2435, 0.0
      %v2483 = vadd.f32 %v2481, %v2482
      %v2484 = vsel %vm1350, %v2436, 0.0
      %v2485 = vadd.f32 %v2483, %v2484
      %v2486 = vsel %vm1350, %v2437, 0.0
      %v2487 = vadd.f32 %v2485, %v2486
      %v2488 = vsel %vm1350, %v2438, 0.0
      %v2489 = vadd.f32 %v2487, %v2488
      %v2490 = vsel %vm1350, %v2439, 0.0
      %v2491 = vadd.f32 %v2489, %v2490
      %v2492 = vsel %vm1350, %v2440, 0.0
      %v2493 = vadd.f32 %v2491, %v2492
      %v2494 = vsel %vm1350, %v2441, 0.0
      %v2495 = vadd.f32 %v2493, %v2494
      %v2496 = vsel %vm1350, %v2442, 0.0
      %v2497 = vadd.f32 %v2495, %v2496
      %v2498 = vsel %vm1350, %v2443, 0.0
      %v2499 = vadd.f32 %v2497, %v2498
      %v2500 = vsel %vm1350, %v2444, 0.0
      %v2501 = vadd.f32 %v2499, %v2500
      %v2502 = vsel %vm1350, %v2445, 0.0
      %v2503 = vadd.f32 %v2501, %v2502
      %v2504 = vsel %vm1350, %v2446, 0.0
      %v2505 = vadd.f32 %v2503, %v2504
      %v2506 = vsel %vm1350, %v2447, 0.0
      %v2507 = vadd.f32 %v2505, %v2506
      %v2508 = vsel %vm1350, %v2448, 0.0
      %v2509 = vadd.f32 %v2507, %v2508
      %v2510 = vsel %vm1350, %v2449, 0.0
      %v2511 = vadd.f32 %v2509, %v2510
      %v2512 = vsel %vm1350, %v2450, 0.0
      %v2513 = vadd.f32 %v2511, %v2512
      %v2514 = vrot.slane %v2513, 4
      %v2515 = vadd.f32 %v2513, %v2514
      %v2516 = vrot.slane %v2515, 2
      %v2517 = vadd.f32 %v2515, %v2516
      %v2518 = vrot.slane %v2517, 1
      %v2519 = vadd.f32 %v2517, %v2518
      %v2520 = vld [vmem:[%s3] sm:$0xff]
      %v2521 = vld [vmem:[%s4] sm:$0x1]
      %v2523 = vsel %vm1350, %v2519, 0
      %2525 = vmatprep.subr.mxu0 0.0
      %2526 = vmatpush1.msra.mxu0 %v2520
      %2527 = vmatprep.subr.mxu0 0.0
      %2528 = vmatpush1.msra.mxu0 0.0
      %2529 = vmatprep.subr.mxu0 0.0
      %2530 = vmatpush1.msra.mxu0 0.0
      %2531 = vmatprep.subr.mxu0 0.0
      %2532 = vmatpush1.msra.mxu0 0.0
      %2533 = vmatprep.subr.mxu0 0.0
      %2534 = vmatpush1.msra.mxu0 0.0
      %2535 = vmatprep.subr.mxu0 0.0
      %2536 = vmatpush1.msra.mxu0 0.0
      %2537 = vmatprep.subr.mxu0 0.0
      %2538 = vmatpush1.msra.mxu0 0.0
      %2539 = vmatprep.subr.mxu0 0.0
      %2540 = vmatpush1.msra.mxu0 0.0
      %2541 = vmatprep.subr.mxu0 0.0
      %2542 = vmatpush1.msra.mxu0 0.0
      %2543 = vmatprep.subr.mxu0 0.0
      %2544 = vmatpush1.msra.mxu0 0.0
      %2545 = vmatprep.subr.mxu0 0.0
      %2546 = vmatpush1.msra.mxu0 0.0
      %2547 = vmatprep.subr.mxu0 0.0
      %2548 = vmatpush1.msra.mxu0 0.0
      %2549 = vmatprep.subr.mxu0 0.0
      %2550 = vmatpush1.msra.mxu0 0.0
      %2551 = vmatprep.subr.mxu0 0.0
      %2552 = vmatpush1.msra.mxu0 0.0
      %2553 = vmatprep.subr.mxu0 0.0
      %2554 = vmatpush1.msra.mxu0 0.0
      %2555 = vmatprep.subr.mxu0 0.0
      %2556 = vmatpush1.msra.mxu0 0.0
      %2557 = vmatprep.subr.mxu0 0.0
      %2558 = vmatpush1.msra.mxu0 0.0
      %2559 = vmatprep.subr.mxu0 0.0
      %2560 = vmatpush1.msra.mxu0 0.0
      %2561 = vmatprep.subr.mxu0 0.0
      %2562 = vmatpush1.msra.mxu0 0.0
      %2563 = vmatprep.subr.mxu0 0.0
      %2564 = vmatpush1.msra.mxu0 0.0
      %2565 = vmatprep.subr.mxu0 0.0
      %2566 = vmatpush1.msra.mxu0 0.0
      %2567 = vmatprep.subr.mxu0 0.0
      %2568 = vmatpush1.msra.mxu0 0.0
      %2569 = vmatprep.subr.mxu0 0.0
      %2570 = vmatpush1.msra.mxu0 0.0
      %2571 = vmatprep.subr.mxu0 0.0
      %2572 = vmatpush1.msra.mxu0 0.0
      %2573 = vmatprep.subr.mxu0 0.0
      %2574 = vmatpush1.msra.mxu0 0.0
      %2575 = vmatprep.subr.mxu0 0.0
      %2576 = vmatpush1.msra.mxu0 0.0
      %2577 = vmatprep.subr.mxu0 0.0
      %2578 = vmatpush1.msra.mxu0 0.0
      %2579 = vmatprep.subr.mxu0 0.0
      %2580 = vmatpush1.msra.mxu0 0.0
      %2581 = vmatprep.subr.mxu0 0.0
      %2582 = vmatpush1.msra.mxu0 0.0
      %2583 = vmatprep.subr.mxu0 0.0
      %2584 = vmatpush1.msra.mxu0 0.0
      %2585 = vmatprep.subr.mxu0 0.0
      %2586 = vmatpush1.msra.mxu0 0.0
      %2587 = vmatprep.subr.mxu0 0.0
      %2588 = vmatpush1.msra.mxu0 0.0
      %2589 = vmatprep.mubr.f32.mxu0 0.0
      %2590 = vmatmul.mubr.f32.gmra.mrb[0].mxu0 %v2523
      %v2591 = vpop.f32.mrb[0].mxu0
      %v2592 = vadd.f32 %v2521, %v2591
      %v2593 = vpop.f32.mrb[0].mxu0
      %2594 = vdwg.mxu0
      %v2595 = vxor.u32 %v2592, 2147483648
      %v2596 = vmul.f32 %v2595, 1.442695
      %v2597 = vpow.pop %v2596
      %v2598 = vadd.f32 %v2597, 1.0
      %v2599 = vrcp.pop %v2598
      %v2600 = vmul.f32 1.0, %v2599
      %v2601 = vlaneseq
      %v2602 = vshrl.u32 %v2601, 7
      %v2603 = vsub.s32 0, %v2602
      %v2604 = vrot.slane %v2600, %v2603
      %v2605 = vmul.f32 %v2419, %v2604
      %v2606 = vmul.f32 %v2420, %v2604
      %v2607 = vmul.f32 %v2421, %v2604
      %v2608 = vmul.f32 %v2422, %v2604
      %v2609 = vmul.f32 %v2423, %v2604
      %v2610 = vmul.f32 %v2424, %v2604
      %v2611 = vmul.f32 %v2425, %v2604
      %v2612 = vmul.f32 %v2426, %v2604
      %v2613 = vmul.f32 %v2427, %v2604
      %v2614 = vmul.f32 %v2428, %v2604
      %v2615 = vmul.f32 %v2429, %v2604
      %v2616 = vmul.f32 %v2430, %v2604
      %v2617 = vmul.f32 %v2431, %v2604
      %v2618 = vmul.f32 %v2432, %v2604
      %v2619 = vmul.f32 %v2433, %v2604
      %v2620 = vmul.f32 %v2434, %v2604
      %v2621 = vmul.f32 %v2435, %v2604
      %v2622 = vmul.f32 %v2436, %v2604
      %v2623 = vmul.f32 %v2437, %v2604
      %v2624 = vmul.f32 %v2438, %v2604
      %v2625 = vmul.f32 %v2439, %v2604
      %v2626 = vmul.f32 %v2440, %v2604
      %v2627 = vmul.f32 %v2441, %v2604
      %v2628 = vmul.f32 %v2442, %v2604
      %v2629 = vmul.f32 %v2443, %v2604
      %v2630 = vmul.f32 %v2444, %v2604
      %v2631 = vmul.f32 %v2445, %v2604
      %v2632 = vmul.f32 %v2446, %v2604
      %v2633 = vmul.f32 %v2447, %v2604
      %v2634 = vmul.f32 %v2448, %v2604
      %v2635 = vmul.f32 %v2449, %v2604
      %v2636 = vmul.f32 %v2450, %v2604
      %2637 = vst.msk [vmem:[%s224] sm:$0xff] %vm1350, %v2605
      %2638 = vst.msk [vmem:[%s224 + $0x8] sm:$0xff] %vm1350, %v2606
      %2639 = vst.msk [vmem:[%s224 + $0x10] sm:$0xff] %vm1350, %v2607
      %2640 = vst.msk [vmem:[%s224 + $0x18] sm:$0xff] %vm1350, %v2608
      %2641 = vst.msk [vmem:[%s224 + $0x20] sm:$0xff] %vm1350, %v2609
      %2642 = vst.msk [vmem:[%s224 + $0x28] sm:$0xff] %vm1350, %v2610
      %2643 = vst.msk [vmem:[%s224 + $0x30] sm:$0xff] %vm1350, %v2611
      %2644 = vst.msk [vmem:[%s224 + $0x38] sm:$0xff] %vm1350, %v2612
      %2645 = vst.msk [vmem:[%s224 + $0x40] sm:$0xff] %vm1350, %v2613
      %2646 = vst.msk [vmem:[%s224 + $0x48] sm:$0xff] %vm1350, %v2614
      %2647 = vst.msk [vmem:[%s224 + $0x50] sm:$0xff] %vm1350, %v2615
      %2648 = vst.msk [vmem:[%s224 + $0x58] sm:$0xff] %vm1350, %v2616
      %2649 = vst.msk [vmem:[%s224 + $0x60] sm:$0xff] %vm1350, %v2617
      %2650 = vst.msk [vmem:[%s224 + $0x68] sm:$0xff] %vm1350, %v2618
      %2651 = vst.msk [vmem:[%s224 + $0x70] sm:$0xff] %vm1350, %v2619
      %2652 = vst.msk [vmem:[%s224 + $0x78] sm:$0xff] %vm1350, %v2620
      %2653 = vst.msk [vmem:[%s224 + $0x80] sm:$0xff] %vm1350, %v2621
      %2654 = vst.msk [vmem:[%s224 + $0x88] sm:$0xff] %vm1350, %v2622
      %2655 = vst.msk [vmem:[%s224 + $0x90] sm:$0xff] %vm1350, %v2623
      %2656 = vst.msk [vmem:[%s224 + $0x98] sm:$0xff] %vm1350, %v2624
      %2657 = vst.msk [vmem:[%s224 + $0xa0] sm:$0xff] %vm1350, %v2625
      %2658 = vst.msk [vmem:[%s224 + $0xa8] sm:$0xff] %vm1350, %v2626
      %2659 = vst.msk [vmem:[%s224 + $0xb0] sm:$0xff] %vm1350, %v2627
      %2660 = vst.msk [vmem:[%s224 + $0xb8] sm:$0xff] %vm1350, %v2628
      %2661 = vst.msk [vmem:[%s224 + $0xc0] sm:$0xff] %vm1350, %v2629
      %2662 = vst.msk [vmem:[%s224 + $0xc8] sm:$0xff] %vm1350, %v2630
      %2663 = vst.msk [vmem:[%s224 + $0xd0] sm:$0xff] %vm1350, %v2631
      %2664 = vst.msk [vmem:[%s224 + $0xd8] sm:$0xff] %vm1350, %v2632
      %2665 = vst.msk [vmem:[%s224 + $0xe0] sm:$0xff] %vm1350, %v2633
      %2666 = vst.msk [vmem:[%s224 + $0xe8] sm:$0xff] %vm1350, %v2634
      %2667 = vst.msk [vmem:[%s224 + $0xf0] sm:$0xff] %vm1350, %v2635
      %2668 = vst.msk [vmem:[%s224 + $0xf8] sm:$0xff] %vm1350, %v2636
      %p2669 = scmp.lt.s32.totalorder %s16, 1
      %s2670 = scalar_select %p2669, %s16, 1
      %s2671 = smul.addr %s2670, 32
      %s2672 = smul.addr %s2671, 8
      %s2673 = scalar_lea.vmem %s5, %s2672
      // Predicated region
      $region41: #{attention_refinement_module.1} parent=39 // pred_check
        %p2674 = pneg %p144
      $region42: #{attention_refinement_module.1} parent=39 // pred_check_branch
        %2676 = sbr.rel (%p2674) target = $region44
      $region43: #{attention_refinement_module.1} parent=39 // pred_region
        _
      $region44: #{attention_refinement_module.1} parent=39 // pred_fallthru
        _
    $region40: #{attention_refinement_module.1} parent=5 // pred_fallthru
      _
    %p2677 = scmp.le.s32.totalorder 2, %s11
    // Predicated region
    $region45: #{attention_refinement_module.1} parent=5 // pred_check
      %p2678 = pneg %p2677
    $region46: #{attention_refinement_module.1} parent=5 // pred_check_branch
      %2680 = sbr.rel (%p2678) target = $region48
    $region47: #{attention_refinement_module.1} parent=5 // pred_region
      %s2681 = ssub.s32 %s11, 2
      // Predicated region
      $region49: #{attention_refinement_module.1} parent=47 // pred_check
        %p2682 = pneg %p150
      $region50: #{attention_refinement_module.1} parent=47 // pred_check_branch
        %2684 = sbr.rel (%p2682) target = $region52
      $region51: #{attention_refinement_module.1} parent=47 // pred_region
        %p2685 = scmp.lt.s32.totalorder %s17, 1
        %s2686 = scalar_select %p2685, %s17, 1
        %s2687 = smul.addr %s2686, 32
        %s2688 = smul.addr %s2687, 8
        %s2689 = scalar_lea.vmem %s5, %s2688
      $region52: #{attention_refinement_module.1} parent=47 // pred_fallthru
        _
    $region48: #{attention_refinement_module.1} parent=5 // pred_fallthru
      _
  $region6: #{attention_refinement_module.1} parent=0 // loop_footer
    %s15 = sadd.s32 1, %s11
  $region7: #{attention_refinement_module.1} parent=0 // loop_footer_branch
    %10 = sbr.rel target = $region3
  $region8: #{attention_refinement_module.1} parent=0 // loop_exit
    _

</llo_original>
